<compile_context>
chip_gen: v6e
topology: v6e:2x2x1
jax: 0.10.0
libtpu: 0.0.40
codegen_flags: <defaults>
</compile_context>

<pallas_src>
import functools

import jax
import jax.numpy as jnp
from jax.experimental import pallas as pl
from jax.experimental.pallas import tpu as pltpu


# ----------------------------------------------------------------------------
# Fused Pallas kernel: whole Net.forward in one invocation
# ----------------------------------------------------------------------------
def _fused_net_kernel(ahat_ref, x_ref, pool_ref, w1_ref, w2_ref, consts_ref,
                      wfc_ref, wlin_ref, blin_ref, out_ref):
    """Runs 5x (GINConv -> pool -> fc) + lin2 with everything VMEM-resident.

    consts_ref[l] rows: 0=b1, 1=b2, 2=bn_scale, 3=bn_shift, 4=b_fc.
    """
    num_layers = w1_ref.shape[0]
    g_pad = pool_ref.shape[0]
    dim = w1_ref.shape[2]

    ahat = ahat_ref[...]        # [N, N]  (A + (1+eps)*I, eps=0)
    pmat = pool_ref[...]        # [G_pad, N]
    h = x_ref[...]              # [N, dim] (features zero-padded to dim)

    acc = jnp.zeros((g_pad, dim), jnp.float32)   # sum of previous layers' x_l_g
    xg = acc

    # Unrolled layer loop: 5 layers, all operands already in VMEM.
    for l in range(num_layers):
        c = consts_ref[l]                         # [8, dim]

        # GINConv: nn((1+eps)*x_i + sum_{j in N(i)} x_j)  with Ahat baked in.
        agg = jnp.dot(ahat, h, preferred_element_type=jnp.float32)
        t = jnp.dot(agg, w1_ref[l], preferred_element_type=jnp.float32) + c[0:1, :]
        t = jnp.maximum(t, 0.0)
        t = jnp.dot(t, w2_ref[l], preferred_element_type=jnp.float32) + c[1:2, :]
        t = jnp.maximum(t, 0.0)
        h = t * c[2:3, :] + c[3:4, :]             # eval-mode BatchNorm1d

        # global_add_pool + fc_l(sum_{i<l} x_i_g + pooled_l), ReLU.
        pooled = jnp.dot(pmat, h, preferred_element_type=jnp.float32)
        s = acc + pooled
        xg = jnp.maximum(
            jnp.dot(s, wfc_ref[l], preferred_element_type=jnp.float32) + c[4:5, :],
            0.0)
        acc = acc + xg

    # lin2: [G_pad, dim] @ [dim, 128] -> lane-dense [G_pad, 128] slab
    # (real result lives in column 0; the wrapper slices it out).
    out_ref[...] = (jnp.dot(xg, wlin_ref[...], preferred_element_type=jnp.float32)
                    + blin_ref[...])


def _vmem_spec():
    return pl.BlockSpec(memory_space=pltpu.MemorySpace.VMEM)


def fused_net(ahat, x_pad, pool_mat, params):
    g_pad = pool_mat.shape[0]
    return pl.pallas_call(
        _fused_net_kernel,
        out_shape=jax.ShapeDtypeStruct((g_pad, 128), jnp.float32),
        in_specs=[_vmem_spec() for _ in range(9)],
        out_specs=_vmem_spec(),
    )(ahat, x_pad, pool_mat,
      params["w1"], params["w2"], params["consts"],
      params["wfc"], params["wlin"], params["blin"])


# ----------------------------------------------------------------------------
# Parameter construction (deterministic, synthetic, PyTorch-style init)
# ----------------------------------------------------------------------------
def _linear_params(key, fan_in, fan_out):
    kw, kb = jax.random.split(key)
    lim = 1.0 / jnp.sqrt(jnp.float32(fan_in))
    # stored as (fan_in, fan_out) so the kernel computes x @ W + b
    w = jax.random.uniform(kw, (fan_in, fan_out), jnp.float32, -lim, lim)
    b = jax.random.uniform(kb, (fan_out,), jnp.float32, -lim, lim)
    return w, b


def _bn_scale_shift(key, dim, eps=1e-5):
    kg, kb = jax.random.split(key)
    gamma = 1.0 + 0.1 * jax.random.normal(kg, (dim,), jnp.float32)
    beta = 0.1 * jax.random.normal(kb, (dim,), jnp.float32)
    # eval mode: running_mean = 0, running_var = 1
    scale = gamma / jnp.sqrt(1.0 + eps)
    shift = beta
    return scale, shift


def make_net_params(key, num_features, dim):
    assert num_features <= dim, "feature dim is zero-padded up to dim"
    in_dims = [num_features, dim, dim, dim, dim]
    w1_list, w2_list, wfc_list, const_list = [], [], [], []
    for layer in range(5):
        key, k1, k2, k3, k4 = jax.random.split(key, 5)
        w1, b1 = _linear_params(k1, in_dims[layer], dim)
        w2, b2 = _linear_params(k2, dim, dim)
        scale, shift = _bn_scale_shift(k3, dim)
        wfc, bfc = _linear_params(k4, dim, dim)
        # zero-pad layer-1 fan_in (11) up to dim so all W1 stack uniformly
        w1p = jnp.zeros((dim, dim), jnp.float32).at[:in_dims[layer], :].set(w1)
        w1_list.append(w1p)
        w2_list.append(w2)
        wfc_list.append(wfc)
        c = (jnp.zeros((8, dim), jnp.float32)
             .at[0].set(b1).at[1].set(b2)
             .at[2].set(scale).at[3].set(shift)
             .at[4].set(bfc))
        const_list.append(c)

    key, klin = jax.random.split(key)
    wlin, blin = _linear_params(klin, dim, 1)           # [dim, 1], [1]
    wlin_pad = jnp.zeros((dim, 128), jnp.float32).at[:, 0:1].set(wlin)
    blin_pad = jnp.zeros((1, 128), jnp.float32).at[0, 0].set(blin[0])

    return {
        "w1": jnp.stack(w1_list),        # [5, dim, dim]
        "w2": jnp.stack(w2_list),        # [5, dim, dim]
        "wfc": jnp.stack(wfc_list),      # [5, dim, dim]
        "consts": jnp.stack(const_list), # [5, 8, dim]
        "wlin": wlin_pad,                # [dim, 128]
        "blin": blin_pad,                # [1, 128]
    }


# ----------------------------------------------------------------------------
# Full forward pass (mirrors Net.forward)
# ----------------------------------------------------------------------------
@functools.partial(jax.jit, static_argnames=("num_nodes", "num_graphs", "dim"))
def net_forward(params, x, edge_index, batch, *, num_nodes, num_graphs, dim):
    num_features = x.shape[1]
    g_pad = -(-num_graphs // 8) * 8   # pad graph count to a full sublane tile

    # --- graph densification (glue, not the hot path) ----------------------
    # TODO(synk): replace with a scalar-prefetched edge/segment aggregation
    #             kernel if this path ever becomes hot at scale.
    src, dst = edge_index[0], edge_index[1]
    diag = jnp.arange(num_nodes)
    eps = 0.0  # GINConv default, train_eps=False
    ahat = (jnp.zeros((num_nodes, num_nodes), jnp.float32)
            .at[dst, src].add(1.0)
            .at[diag, diag].add(1.0 + eps))
    pool_mat = (jnp.zeros((g_pad, num_nodes), jnp.float32)
                .at[batch, jnp.arange(num_nodes)].add(1.0))
    x_pad = jnp.zeros((num_nodes, dim), jnp.float32).at[:, :num_features].set(x)

    # --- fused Pallas kernel: all 5 layers + pooling + final linear --------
    out_pad = fused_net(ahat, x_pad, pool_mat, params)   # [g_pad, 128]
    return out_pad[:num_graphs, 0]                       # [G]


# ----------------------------------------------------------------------------
# Main
# ----------------------------------------------------------------------------
if __name__ == "__main__":
    NUM_FEATURES = 11   # QM9 node-feature width
    DIM = 32            # args.dim (hidden width)
    NUM_NODES = 16
    NUM_GRAPHS = 2
    NUM_EDGES = 40

    key = jax.random.PRNGKey(0)
    key, kx, ke = jax.random.split(key, 3)

    x = jax.random.normal(kx, (NUM_NODES, NUM_FEATURES), jnp.float32)
    edge_index = jax.random.randint(ke, (2, NUM_EDGES), 0, NUM_NODES,
                                    dtype=jnp.int32)
    batch = jnp.concatenate([
        jnp.zeros((NUM_NODES // 2,), jnp.int32),
        jnp.ones((NUM_NODES - NUM_NODES // 2,), jnp.int32),
    ])

    params = make_net_params(key, NUM_FEATURES, DIM)

    out = net_forward(params, x, edge_index, batch,
                      num_nodes=NUM_NODES, num_graphs=NUM_GRAPHS, dim=DIM)
    out = jax.block_until_ready(out)
    assert out.shape == (NUM_GRAPHS,)
    assert bool(jnp.all(jnp.isfinite(out)))
    print("KERNEL_OK")
</pallas_src>

<mosaic_0001>
module attributes {stable_mosaic.version = 11 : i64} {
  func.func private @main(%arg0: i32) attributes {dimension_semantics = [#tpu.dimension_semantics<core_parallel>], iteration_bounds = array<i64: 2>, tpu.core_type = #tpu.core_type<sc_scalar_subcore>, window_params = []} {
    return
  }
}

module attributes {stable_mosaic.version = 11 : i64} {
  func.func private @main(%arg0: i32) attributes {dimension_semantics = [#tpu.dimension_semantics<core_parallel>], iteration_bounds = array<i64: 2>, tpu.core_type = #tpu.core_type<sc_scalar_subcore>, window_params = []} {
    return
  }
}

module attributes {stable_mosaic.version = 11 : i64} {
  func.func @_fused_net_kernel(%arg0: memref<16x16xf32, #tpu.memory_space<vmem>>, %arg1: memref<16x32xf32, #tpu.memory_space<vmem>>, %arg2: memref<8x16xf32, #tpu.memory_space<vmem>>, %arg3: memref<5x32x32xf32, #tpu.memory_space<vmem>>, %arg4: memref<5x32x32xf32, #tpu.memory_space<vmem>>, %arg5: memref<5x8x32xf32, #tpu.memory_space<vmem>>, %arg6: memref<5x32x32xf32, #tpu.memory_space<vmem>>, %arg7: memref<32x128xf32, #tpu.memory_space<vmem>>, %arg8: memref<1x128xf32, #tpu.memory_space<vmem>>, %arg9: memref<8x128xf32, #tpu.memory_space<vmem>>) attributes {dimension_semantics = [], scalar_prefetch = 0 : i64, scratch_operands = 0 : i64, tpu.core_type = #tpu.core_type<tc>} {
    %c0 = arith.constant 0 : index
    %c0_0 = arith.constant 0 : index
    %0 = vector.load %arg0[%c0, %c0_0] : memref<16x16xf32, #tpu.memory_space<vmem>>, vector<16x16xf32>
    %c0_1 = arith.constant 0 : index
    %c0_2 = arith.constant 0 : index
    %1 = vector.load %arg2[%c0_1, %c0_2] : memref<8x16xf32, #tpu.memory_space<vmem>>, vector<8x16xf32>
    %c0_3 = arith.constant 0 : index
    %c0_4 = arith.constant 0 : index
    %2 = vector.load %arg1[%c0_3, %c0_4] : memref<16x32xf32, #tpu.memory_space<vmem>>, vector<16x32xf32>
    %cst = arith.constant 0.000000e+00 : f32
    %3 = vector.broadcast %cst : f32 to vector<8x32xf32>
    %c0_5 = arith.constant 0 : index
    %c0_6 = arith.constant 0 : index
    %c0_7 = arith.constant 0 : index
    %4 = vector.load %arg5[%c0_5, %c0_6, %c0_7] : memref<5x8x32xf32, #tpu.memory_space<vmem>>, vector<1x8x32xf32>
    %5 = vector.shape_cast %4 : vector<1x8x32xf32> to vector<8x32xf32>
    %cst_8 = arith.constant dense<0.000000e+00> : vector<16x32xf32>
    %6 = tpu.matmul %0, %2, %cst_8 {dimension_numbers = #tpu.dot_dimension_numbers<[1], [0], [0], [1], [0, 0, 1, 1], [], []>} : vector<16x16xf32>, vector<16x32xf32>, vector<16x32xf32> -> vector<16x32xf32>
    %c0_9 = arith.constant 0 : index
    %c0_10 = arith.constant 0 : index
    %c0_11 = arith.constant 0 : index
    %7 = vector.load %arg3[%c0_9, %c0_10, %c0_11] : memref<5x32x32xf32, #tpu.memory_space<vmem>>, vector<1x32x32xf32>
    %8 = vector.shape_cast %7 : vector<1x32x32xf32> to vector<32x32xf32>
    %cst_12 = arith.constant dense<0.000000e+00> : vector<16x32xf32>
    %9 = tpu.matmul %6, %8, %cst_12 {dimension_numbers = #tpu.dot_dimension_numbers<[1], [0], [0], [1], [0, 0, 1, 1], [], []>} : vector<16x32xf32>, vector<32x32xf32>, vector<16x32xf32> -> vector<16x32xf32>
    %10 = vector.extract_strided_slice %5 {offsets = [0, 0], sizes = [1, 32], strides = [1, 1]} : vector<8x32xf32> to vector<1x32xf32>
    %11 = vector.broadcast %10 : vector<1x32xf32> to vector<16x32xf32>
    %12 = arith.addf %9, %11 : vector<16x32xf32>
    %cst_13 = arith.constant 0.000000e+00 : f32
    %13 = vector.broadcast %cst_13 : f32 to vector<16x32xf32>
    %14 = arith.maximumf %12, %13 : vector<16x32xf32>
    %c0_14 = arith.constant 0 : index
    %c0_15 = arith.constant 0 : index
    %c0_16 = arith.constant 0 : index
    %15 = vector.load %arg4[%c0_14, %c0_15, %c0_16] : memref<5x32x32xf32, #tpu.memory_space<vmem>>, vector<1x32x32xf32>
    %16 = vector.shape_cast %15 : vector<1x32x32xf32> to vector<32x32xf32>
    %cst_17 = arith.constant dense<0.000000e+00> : vector<16x32xf32>
    %17 = tpu.matmul %14, %16, %cst_17 {dimension_numbers = #tpu.dot_dimension_numbers<[1], [0], [0], [1], [0, 0, 1, 1], [], []>} : vector<16x32xf32>, vector<32x32xf32>, vector<16x32xf32> -> vector<16x32xf32>
    %18 = vector.extract_strided_slice %5 {offsets = [1, 0], sizes = [1, 32], strides = [1, 1]} : vector<8x32xf32> to vector<1x32xf32>
    %19 = vector.broadcast %18 : vector<1x32xf32> to vector<16x32xf32>
    %20 = arith.addf %17, %19 : vector<16x32xf32>
    %cst_18 = arith.constant 0.000000e+00 : f32
    %21 = vector.broadcast %cst_18 : f32 to vector<16x32xf32>
    %22 = arith.maximumf %20, %21 : vector<16x32xf32>
    %23 = vector.extract_strided_slice %5 {offsets = [2, 0], sizes = [1, 32], strides = [1, 1]} : vector<8x32xf32> to vector<1x32xf32>
    %24 = vector.broadcast %23 : vector<1x32xf32> to vector<16x32xf32>
    %25 = arith.mulf %22, %24 : vector<16x32xf32>
    %26 = vector.extract_strided_slice %5 {offsets = [3, 0], sizes = [1, 32], strides = [1, 1]} : vector<8x32xf32> to vector<1x32xf32>
    %27 = vector.broadcast %26 : vector<1x32xf32> to vector<16x32xf32>
    %28 = arith.addf %25, %27 : vector<16x32xf32>
    %cst_19 = arith.constant dense<0.000000e+00> : vector<8x32xf32>
    %29 = tpu.matmul %1, %28, %cst_19 {dimension_numbers = #tpu.dot_dimension_numbers<[1], [0], [0], [1], [0, 0, 1, 1], [], []>} : vector<8x16xf32>, vector<16x32xf32>, vector<8x32xf32> -> vector<8x32xf32>
    %30 = arith.addf %3, %29 : vector<8x32xf32>
    %c0_20 = arith.constant 0 : index
    %c0_21 = arith.constant 0 : index
    %c0_22 = arith.constant 0 : index
    %31 = vector.load %arg6[%c0_20, %c0_21, %c0_22] : memref<5x32x32xf32, #tpu.memory_space<vmem>>, vector<1x32x32xf32>
    %32 = vector.shape_cast %31 : vector<1x32x32xf32> to vector<32x32xf32>
    %cst_23 = arith.constant dense<0.000000e+00> : vector<8x32xf32>
    %33 = tpu.matmul %30, %32, %cst_23 {dimension_numbers = #tpu.dot_dimension_numbers<[1], [0], [0], [1], [0, 0, 1, 1], [], []>} : vector<8x32xf32>, vector<32x32xf32>, vector<8x32xf32> -> vector<8x32xf32>
    %34 = vector.extract_strided_slice %5 {offsets = [4, 0], sizes = [1, 32], strides = [1, 1]} : vector<8x32xf32> to vector<1x32xf32>
    %35 = vector.broadcast %34 : vector<1x32xf32> to vector<8x32xf32>
    %36 = arith.addf %33, %35 : vector<8x32xf32>
    %cst_24 = arith.constant 0.000000e+00 : f32
    %37 = vector.broadcast %cst_24 : f32 to vector<8x32xf32>
    %38 = arith.maximumf %36, %37 : vector<8x32xf32>
    %39 = arith.addf %3, %38 : vector<8x32xf32>
    %c1 = arith.constant 1 : index
    %c0_25 = arith.constant 0 : index
    %c0_26 = arith.constant 0 : index
    %40 = vector.load %arg5[%c1, %c0_25, %c0_26] : memref<5x8x32xf32, #tpu.memory_space<vmem>>, vector<1x8x32xf32>
    %41 = vector.shape_cast %40 : vector<1x8x32xf32> to vector<8x32xf32>
    %cst_27 = arith.constant dense<0.000000e+00> : vector<16x32xf32>
    %42 = tpu.matmul %0, %28, %cst_27 {dimension_numbers = #tpu.dot_dimension_numbers<[1], [0], [0], [1], [0, 0, 1, 1], [], []>} : vector<16x16xf32>, vector<16x32xf32>, vector<16x32xf32> -> vector<16x32xf32>
    %c1_28 = arith.constant 1 : index
    %c0_29 = arith.constant 0 : index
    %c0_30 = arith.constant 0 : index
    %43 = vector.load %arg3[%c1_28, %c0_29, %c0_30] : memref<5x32x32xf32, #tpu.memory_space<vmem>>, vector<1x32x32xf32>
    %44 = vector.shape_cast %43 : vector<1x32x32xf32> to vector<32x32xf32>
    %cst_31 = arith.constant dense<0.000000e+00> : vector<16x32xf32>
    %45 = tpu.matmul %42, %44, %cst_31 {dimension_numbers = #tpu.dot_dimension_numbers<[1], [0], [0], [1], [0, 0, 1, 1], [], []>} : vector<16x32xf32>, vector<32x32xf32>, vector<16x32xf32> -> vector<16x32xf32>
    %46 = vector.extract_strided_slice %41 {offsets = [0, 0], sizes = [1, 32], strides = [1, 1]} : vector<8x32xf32> to vector<1x32xf32>
    %47 = vector.broadcast %46 : vector<1x32xf32> to vector<16x32xf32>
    %48 = arith.addf %45, %47 : vector<16x32xf32>
    %cst_32 = arith.constant 0.000000e+00 : f32
    %49 = vector.broadcast %cst_32 : f32 to vector<16x32xf32>
    %50 = arith.maximumf %48, %49 : vector<16x32xf32>
    %c1_33 = arith.constant 1 : index
    %c0_34 = arith.constant 0 : index
    %c0_35 = arith.constant 0 : index
    %51 = vector.load %arg4[%c1_33, %c0_34, %c0_35] : memref<5x32x32xf32, #tpu.memory_space<vmem>>, vector<1x32x32xf32>
    %52 = vector.shape_cast %51 : vector<1x32x32xf32> to vector<32x32xf32>
    %cst_36 = arith.constant dense<0.000000e+00> : vector<16x32xf32>
    %53 = tpu.matmul %50, %52, %cst_36 {dimension_numbers = #tpu.dot_dimension_numbers<[1], [0], [0], [1], [0, 0, 1, 1], [], []>} : vector<16x32xf32>, vector<32x32xf32>, vector<16x32xf32> -> vector<16x32xf32>
    %54 = vector.extract_strided_slice %41 {offsets = [1, 0], sizes = [1, 32], strides = [1, 1]} : vector<8x32xf32> to vector<1x32xf32>
    %55 = vector.broadcast %54 : vector<1x32xf32> to vector<16x32xf32>
    %56 = arith.addf %53, %55 : vector<16x32xf32>
    %cst_37 = arith.constant 0.000000e+00 : f32
    %57 = vector.broadcast %cst_37 : f32 to vector<16x32xf32>
    %58 = arith.maximumf %56, %57 : vector<16x32xf32>
    %59 = vector.extract_strided_slice %41 {offsets = [2, 0], sizes = [1, 32], strides = [1, 1]} : vector<8x32xf32> to vector<1x32xf32>
    %60 = vector.broadcast %59 : vector<1x32xf32> to vector<16x32xf32>
    %61 = arith.mulf %58, %60 : vector<16x32xf32>
    %62 = vector.extract_strided_slice %41 {offsets = [3, 0], sizes = [1, 32], strides = [1, 1]} : vector<8x32xf32> to vector<1x32xf32>
    %63 = vector.broadcast %62 : vector<1x32xf32> to vector<16x32xf32>
    %64 = arith.addf %61, %63 : vector<16x32xf32>
    %cst_38 = arith.constant dense<0.000000e+00> : vector<8x32xf32>
    %65 = tpu.matmul %1, %64, %cst_38 {dimension_numbers = #tpu.dot_dimension_numbers<[1], [0], [0], [1], [0, 0, 1, 1], [], []>} : vector<8x16xf32>, vector<16x32xf32>, vector<8x32xf32> -> vector<8x32xf32>
    %66 = arith.addf %39, %65 : vector<8x32xf32>
    %c1_39 = arith.constant 1 : index
    %c0_40 = arith.constant 0 : index
    %c0_41 = arith.constant 0 : index
    %67 = vector.load %arg6[%c1_39, %c0_40, %c0_41] : memref<5x32x32xf32, #tpu.memory_space<vmem>>, vector<1x32x32xf32>
    %68 = vector.shape_cast %67 : vector<1x32x32xf32> to vector<32x32xf32>
    %cst_42 = arith.constant dense<0.000000e+00> : vector<8x32xf32>
    %69 = tpu.matmul %66, %68, %cst_42 {dimension_numbers = #tpu.dot_dimension_numbers<[1], [0], [0], [1], [0, 0, 1, 1], [], []>} : vector<8x32xf32>, vector<32x32xf32>, vector<8x32xf32> -> vector<8x32xf32>
    %70 = vector.extract_strided_slice %41 {offsets = [4, 0], sizes = [1, 32], strides = [1, 1]} : vector<8x32xf32> to vector<1x32xf32>
    %71 = vector.broadcast %70 : vector<1x32xf32> to vector<8x32xf32>
    %72 = arith.addf %69, %71 : vector<8x32xf32>
    %cst_43 = arith.constant 0.000000e+00 : f32
    %73 = vector.broadcast %cst_43 : f32 to vector<8x32xf32>
    %74 = arith.maximumf %72, %73 : vector<8x32xf32>
    %75 = arith.addf %39, %74 : vector<8x32xf32>
    %c2 = arith.constant 2 : index
    %c0_44 = arith.constant 0 : index
    %c0_45 = arith.constant 0 : index
    %76 = vector.load %arg5[%c2, %c0_44, %c0_45] : memref<5x8x32xf32, #tpu.memory_space<vmem>>, vector<1x8x32xf32>
    %77 = vector.shape_cast %76 : vector<1x8x32xf32> to vector<8x32xf32>
    %cst_46 = arith.constant dense<0.000000e+00> : vector<16x32xf32>
    %78 = tpu.matmul %0, %64, %cst_46 {dimension_numbers = #tpu.dot_dimension_numbers<[1], [0], [0], [1], [0, 0, 1, 1], [], []>} : vector<16x16xf32>, vector<16x32xf32>, vector<16x32xf32> -> vector<16x32xf32>
    %c2_47 = arith.constant 2 : index
    %c0_48 = arith.constant 0 : index
    %c0_49 = arith.constant 0 : index
    %79 = vector.load %arg3[%c2_47, %c0_48, %c0_49] : memref<5x32x32xf32, #tpu.memory_space<vmem>>, vector<1x32x32xf32>
    %80 = vector.shape_cast %79 : vector<1x32x32xf32> to vector<32x32xf32>
    %cst_50 = arith.constant dense<0.000000e+00> : vector<16x32xf32>
    %81 = tpu.matmul %78, %80, %cst_50 {dimension_numbers = #tpu.dot_dimension_numbers<[1], [0], [0], [1], [0, 0, 1, 1], [], []>} : vector<16x32xf32>, vector<32x32xf32>, vector<16x32xf32> -> vector<16x32xf32>
    %82 = vector.extract_strided_slice %77 {offsets = [0, 0], sizes = [1, 32], strides = [1, 1]} : vector<8x32xf32> to vector<1x32xf32>
    %83 = vector.broadcast %82 : vector<1x32xf32> to vector<16x32xf32>
    %84 = arith.addf %81, %83 : vector<16x32xf32>
    %cst_51 = arith.constant 0.000000e+00 : f32
    %85 = vector.broadcast %cst_51 : f32 to vector<16x32xf32>
    %86 = arith.maximumf %84, %85 : vector<16x32xf32>
    %c2_52 = arith.constant 2 : index
    %c0_53 = arith.constant 0 : index
    %c0_54 = arith.constant 0 : index
    %87 = vector.load %arg4[%c2_52, %c0_53, %c0_54] : memref<5x32x32xf32, #tpu.memory_space<vmem>>, vector<1x32x32xf32>
    %88 = vector.shape_cast %87 : vector<1x32x32xf32> to vector<32x32xf32>
    %cst_55 = arith.constant dense<0.000000e+00> : vector<16x32xf32>
    %89 = tpu.matmul %86, %88, %cst_55 {dimension_numbers = #tpu.dot_dimension_numbers<[1], [0], [0], [1], [0, 0, 1, 1], [], []>} : vector<16x32xf32>, vector<32x32xf32>, vector<16x32xf32> -> vector<16x32xf32>
    %90 = vector.extract_strided_slice %77 {offsets = [1, 0], sizes = [1, 32], strides = [1, 1]} : vector<8x32xf32> to vector<1x32xf32>
    %91 = vector.broadcast %90 : vector<1x32xf32> to vector<16x32xf32>
    %92 = arith.addf %89, %91 : vector<16x32xf32>
    %cst_56 = arith.constant 0.000000e+00 : f32
    %93 = vector.broadcast %cst_56 : f32 to vector<16x32xf32>
    %94 = arith.maximumf %92, %93 : vector<16x32xf32>
    %95 = vector.extract_strided_slice %77 {offsets = [2, 0], sizes = [1, 32], strides = [1, 1]} : vector<8x32xf32> to vector<1x32xf32>
    %96 = vector.broadcast %95 : vector<1x32xf32> to vector<16x32xf32>
    %97 = arith.mulf %94, %96 : vector<16x32xf32>
    %98 = vector.extract_strided_slice %77 {offsets = [3, 0], sizes = [1, 32], strides = [1, 1]} : vector<8x32xf32> to vector<1x32xf32>
    %99 = vector.broadcast %98 : vector<1x32xf32> to vector<16x32xf32>
    %100 = arith.addf %97, %99 : vector<16x32xf32>
    %cst_57 = arith.constant dense<0.000000e+00> : vector<8x32xf32>
    %101 = tpu.matmul %1, %100, %cst_57 {dimension_numbers = #tpu.dot_dimension_numbers<[1], [0], [0], [1], [0, 0, 1, 1], [], []>} : vector<8x16xf32>, vector<16x32xf32>, vector<8x32xf32> -> vector<8x32xf32>
    %102 = arith.addf %75, %101 : vector<8x32xf32>
    %c2_58 = arith.constant 2 : index
    %c0_59 = arith.constant 0 : index
    %c0_60 = arith.constant 0 : index
    %103 = vector.load %arg6[%c2_58, %c0_59, %c0_60] : memref<5x32x32xf32, #tpu.memory_space<vmem>>, vector<1x32x32xf32>
    %104 = vector.shape_cast %103 : vector<1x32x32xf32> to vector<32x32xf32>
    %cst_61 = arith.constant dense<0.000000e+00> : vector<8x32xf32>
    %105 = tpu.matmul %102, %104, %cst_61 {dimension_numbers = #tpu.dot_dimension_numbers<[1], [0], [0], [1], [0, 0, 1, 1], [], []>} : vector<8x32xf32>, vector<32x32xf32>, vector<8x32xf32> -> vector<8x32xf32>
    %106 = vector.extract_strided_slice %77 {offsets = [4, 0], sizes = [1, 32], strides = [1, 1]} : vector<8x32xf32> to vector<1x32xf32>
    %107 = vector.broadcast %106 : vector<1x32xf32> to vector<8x32xf32>
    %108 = arith.addf %105, %107 : vector<8x32xf32>
    %cst_62 = arith.constant 0.000000e+00 : f32
    %109 = vector.broadcast %cst_62 : f32 to vector<8x32xf32>
    %110 = arith.maximumf %108, %109 : vector<8x32xf32>
    %111 = arith.addf %75, %110 : vector<8x32xf32>
    %c3 = arith.constant 3 : index
    %c0_63 = arith.constant 0 : index
    %c0_64 = arith.constant 0 : index
    %112 = vector.load %arg5[%c3, %c0_63, %c0_64] : memref<5x8x32xf32, #tpu.memory_space<vmem>>, vector<1x8x32xf32>
    %113 = vector.shape_cast %112 : vector<1x8x32xf32> to vector<8x32xf32>
    %cst_65 = arith.constant dense<0.000000e+00> : vector<16x32xf32>
    %114 = tpu.matmul %0, %100, %cst_65 {dimension_numbers = #tpu.dot_dimension_numbers<[1], [0], [0], [1], [0, 0, 1, 1], [], []>} : vector<16x16xf32>, vector<16x32xf32>, vector<16x32xf32> -> vector<16x32xf32>
    %c3_66 = arith.constant 3 : index
    %c0_67 = arith.constant 0 : index
    %c0_68 = arith.constant 0 : index
    %115 = vector.load %arg3[%c3_66, %c0_67, %c0_68] : memref<5x32x32xf32, #tpu.memory_space<vmem>>, vector<1x32x32xf32>
    %116 = vector.shape_cast %115 : vector<1x32x32xf32> to vector<32x32xf32>
    %cst_69 = arith.constant dense<0.000000e+00> : vector<16x32xf32>
    %117 = tpu.matmul %114, %116, %cst_69 {dimension_numbers = #tpu.dot_dimension_numbers<[1], [0], [0], [1], [0, 0, 1, 1], [], []>} : vector<16x32xf32>, vector<32x32xf32>, vector<16x32xf32> -> vector<16x32xf32>
    %118 = vector.extract_strided_slice %113 {offsets = [0, 0], sizes = [1, 32], strides = [1, 1]} : vector<8x32xf32> to vector<1x32xf32>
    %119 = vector.broadcast %118 : vector<1x32xf32> to vector<16x32xf32>
    %120 = arith.addf %117, %119 : vector<16x32xf32>
    %cst_70 = arith.constant 0.000000e+00 : f32
    %121 = vector.broadcast %cst_70 : f32 to vector<16x32xf32>
    %122 = arith.maximumf %120, %121 : vector<16x32xf32>
    %c3_71 = arith.constant 3 : index
    %c0_72 = arith.constant 0 : index
    %c0_73 = arith.constant 0 : index
    %123 = vector.load %arg4[%c3_71, %c0_72, %c0_73] : memref<5x32x32xf32, #tpu.memory_space<vmem>>, vector<1x32x32xf32>
    %124 = vector.shape_cast %123 : vector<1x32x32xf32> to vector<32x32xf32>
    %cst_74 = arith.constant dense<0.000000e+00> : vector<16x32xf32>
    %125 = tpu.matmul %122, %124, %cst_74 {dimension_numbers = #tpu.dot_dimension_numbers<[1], [0], [0], [1], [0, 0, 1, 1], [], []>} : vector<16x32xf32>, vector<32x32xf32>, vector<16x32xf32> -> vector<16x32xf32>
    %126 = vector.extract_strided_slice %113 {offsets = [1, 0], sizes = [1, 32], strides = [1, 1]} : vector<8x32xf32> to vector<1x32xf32>
    %127 = vector.broadcast %126 : vector<1x32xf32> to vector<16x32xf32>
    %128 = arith.addf %125, %127 : vector<16x32xf32>
    %cst_75 = arith.constant 0.000000e+00 : f32
    %129 = vector.broadcast %cst_75 : f32 to vector<16x32xf32>
    %130 = arith.maximumf %128, %129 : vector<16x32xf32>
    %131 = vector.extract_strided_slice %113 {offsets = [2, 0], sizes = [1, 32], strides = [1, 1]} : vector<8x32xf32> to vector<1x32xf32>
    %132 = vector.broadcast %131 : vector<1x32xf32> to vector<16x32xf32>
    %133 = arith.mulf %130, %132 : vector<16x32xf32>
    %134 = vector.extract_strided_slice %113 {offsets = [3, 0], sizes = [1, 32], strides = [1, 1]} : vector<8x32xf32> to vector<1x32xf32>
    %135 = vector.broadcast %134 : vector<1x32xf32> to vector<16x32xf32>
    %136 = arith.addf %133, %135 : vector<16x32xf32>
    %cst_76 = arith.constant dense<0.000000e+00> : vector<8x32xf32>
    %137 = tpu.matmul %1, %136, %cst_76 {dimension_numbers = #tpu.dot_dimension_numbers<[1], [0], [0], [1], [0, 0, 1, 1], [], []>} : vector<8x16xf32>, vector<16x32xf32>, vector<8x32xf32> -> vector<8x32xf32>
    %138 = arith.addf %111, %137 : vector<8x32xf32>
    %c3_77 = arith.constant 3 : index
    %c0_78 = arith.constant 0 : index
    %c0_79 = arith.constant 0 : index
    %139 = vector.load %arg6[%c3_77, %c0_78, %c0_79] : memref<5x32x32xf32, #tpu.memory_space<vmem>>, vector<1x32x32xf32>
    %140 = vector.shape_cast %139 : vector<1x32x32xf32> to vector<32x32xf32>
    %cst_80 = arith.constant dense<0.000000e+00> : vector<8x32xf32>
    %141 = tpu.matmul %138, %140, %cst_80 {dimension_numbers = #tpu.dot_dimension_numbers<[1], [0], [0], [1], [0, 0, 1, 1], [], []>} : vector<8x32xf32>, vector<32x32xf32>, vector<8x32xf32> -> vector<8x32xf32>
    %142 = vector.extract_strided_slice %113 {offsets = [4, 0], sizes = [1, 32], strides = [1, 1]} : vector<8x32xf32> to vector<1x32xf32>
    %143 = vector.broadcast %142 : vector<1x32xf32> to vector<8x32xf32>
    %144 = arith.addf %141, %143 : vector<8x32xf32>
    %cst_81 = arith.constant 0.000000e+00 : f32
    %145 = vector.broadcast %cst_81 : f32 to vector<8x32xf32>
    %146 = arith.maximumf %144, %145 : vector<8x32xf32>
    %147 = arith.addf %111, %146 : vector<8x32xf32>
    %c4 = arith.constant 4 : index
    %c0_82 = arith.constant 0 : index
    %c0_83 = arith.constant 0 : index
    %148 = vector.load %arg5[%c4, %c0_82, %c0_83] : memref<5x8x32xf32, #tpu.memory_space<vmem>>, vector<1x8x32xf32>
    %149 = vector.shape_cast %148 : vector<1x8x32xf32> to vector<8x32xf32>
    %cst_84 = arith.constant dense<0.000000e+00> : vector<16x32xf32>
    %150 = tpu.matmul %0, %136, %cst_84 {dimension_numbers = #tpu.dot_dimension_numbers<[1], [0], [0], [1], [0, 0, 1, 1], [], []>} : vector<16x16xf32>, vector<16x32xf32>, vector<16x32xf32> -> vector<16x32xf32>
    %c4_85 = arith.constant 4 : index
    %c0_86 = arith.constant 0 : index
    %c0_87 = arith.constant 0 : index
    %151 = vector.load %arg3[%c4_85, %c0_86, %c0_87] : memref<5x32x32xf32, #tpu.memory_space<vmem>>, vector<1x32x32xf32>
    %152 = vector.shape_cast %151 : vector<1x32x32xf32> to vector<32x32xf32>
    %cst_88 = arith.constant dense<0.000000e+00> : vector<16x32xf32>
    %153 = tpu.matmul %150, %152, %cst_88 {dimension_numbers = #tpu.dot_dimension_numbers<[1], [0], [0], [1], [0, 0, 1, 1], [], []>} : vector<16x32xf32>, vector<32x32xf32>, vector<16x32xf32> -> vector<16x32xf32>
    %154 = vector.extract_strided_slice %149 {offsets = [0, 0], sizes = [1, 32], strides = [1, 1]} : vector<8x32xf32> to vector<1x32xf32>
    %155 = vector.broadcast %154 : vector<1x32xf32> to vector<16x32xf32>
    %156 = arith.addf %153, %155 : vector<16x32xf32>
    %cst_89 = arith.constant 0.000000e+00 : f32
    %157 = vector.broadcast %cst_89 : f32 to vector<16x32xf32>
    %158 = arith.maximumf %156, %157 : vector<16x32xf32>
    %c4_90 = arith.constant 4 : index
    %c0_91 = arith.constant 0 : index
    %c0_92 = arith.constant 0 : index
    %159 = vector.load %arg4[%c4_90, %c0_91, %c0_92] : memref<5x32x32xf32, #tpu.memory_space<vmem>>, vector<1x32x32xf32>
    %160 = vector.shape_cast %159 : vector<1x32x32xf32> to vector<32x32xf32>
    %cst_93 = arith.constant dense<0.000000e+00> : vector<16x32xf32>
    %161 = tpu.matmul %158, %160, %cst_93 {dimension_numbers = #tpu.dot_dimension_numbers<[1], [0], [0], [1], [0, 0, 1, 1], [], []>} : vector<16x32xf32>, vector<32x32xf32>, vector<16x32xf32> -> vector<16x32xf32>
    %162 = vector.extract_strided_slice %149 {offsets = [1, 0], sizes = [1, 32], strides = [1, 1]} : vector<8x32xf32> to vector<1x32xf32>
    %163 = vector.broadcast %162 : vector<1x32xf32> to vector<16x32xf32>
    %164 = arith.addf %161, %163 : vector<16x32xf32>
    %cst_94 = arith.constant 0.000000e+00 : f32
    %165 = vector.broadcast %cst_94 : f32 to vector<16x32xf32>
    %166 = arith.maximumf %164, %165 : vector<16x32xf32>
    %167 = vector.extract_strided_slice %149 {offsets = [2, 0], sizes = [1, 32], strides = [1, 1]} : vector<8x32xf32> to vector<1x32xf32>
    %168 = vector.broadcast %167 : vector<1x32xf32> to vector<16x32xf32>
    %169 = arith.mulf %166, %168 : vector<16x32xf32>
    %170 = vector.extract_strided_slice %149 {offsets = [3, 0], sizes = [1, 32], strides = [1, 1]} : vector<8x32xf32> to vector<1x32xf32>
    %171 = vector.broadcast %170 : vector<1x32xf32> to vector<16x32xf32>
    %172 = arith.addf %169, %171 : vector<16x32xf32>
    %cst_95 = arith.constant dense<0.000000e+00> : vector<8x32xf32>
    %173 = tpu.matmul %1, %172, %cst_95 {dimension_numbers = #tpu.dot_dimension_numbers<[1], [0], [0], [1], [0, 0, 1, 1], [], []>} : vector<8x16xf32>, vector<16x32xf32>, vector<8x32xf32> -> vector<8x32xf32>
    %174 = arith.addf %147, %173 : vector<8x32xf32>
    %c4_96 = arith.constant 4 : index
    %c0_97 = arith.constant 0 : index
    %c0_98 = arith.constant 0 : index
    %175 = vector.load %arg6[%c4_96, %c0_97, %c0_98] : memref<5x32x32xf32, #tpu.memory_space<vmem>>, vector<1x32x32xf32>
    %176 = vector.shape_cast %175 : vector<1x32x32xf32> to vector<32x32xf32>
    %cst_99 = arith.constant dense<0.000000e+00> : vector<8x32xf32>
    %177 = tpu.matmul %174, %176, %cst_99 {dimension_numbers = #tpu.dot_dimension_numbers<[1], [0], [0], [1], [0, 0, 1, 1], [], []>} : vector<8x32xf32>, vector<32x32xf32>, vector<8x32xf32> -> vector<8x32xf32>
    %178 = vector.extract_strided_slice %149 {offsets = [4, 0], sizes = [1, 32], strides = [1, 1]} : vector<8x32xf32> to vector<1x32xf32>
    %179 = vector.broadcast %178 : vector<1x32xf32> to vector<8x32xf32>
    %180 = arith.addf %177, %179 : vector<8x32xf32>
    %cst_100 = arith.constant 0.000000e+00 : f32
    %181 = vector.broadcast %cst_100 : f32 to vector<8x32xf32>
    %182 = arith.maximumf %180, %181 : vector<8x32xf32>
    %c0_101 = arith.constant 0 : index
    %c0_102 = arith.constant 0 : index
    %183 = vector.load %arg7[%c0_101, %c0_102] : memref<32x128xf32, #tpu.memory_space<vmem>>, vector<32x128xf32>
    %cst_103 = arith.constant dense<0.000000e+00> : vector<8x128xf32>
    %184 = tpu.matmul %182, %183, %cst_103 {dimension_numbers = #tpu.dot_dimension_numbers<[1], [0], [0], [1], [0, 0, 1, 1], [], []>} : vector<8x32xf32>, vector<32x128xf32>, vector<8x128xf32> -> vector<8x128xf32>
    %c0_104 = arith.constant 0 : index
    %c0_105 = arith.constant 0 : index
    %185 = vector.load %arg8[%c0_104, %c0_105] : memref<1x128xf32, #tpu.memory_space<vmem>>, vector<1x128xf32>
    %186 = vector.broadcast %185 : vector<1x128xf32> to vector<8x128xf32>
    %187 = arith.addf %184, %186 : vector<8x128xf32>
    %c0_106 = arith.constant 0 : index
    %c0_107 = arith.constant 0 : index
    %188 = vector.load %arg9[%c0_106, %c0_107] : memref<8x128xf32, #tpu.memory_space<vmem>>, vector<8x128xf32>
    tpu.vector_store %arg9[%c0_106, %c0_107], %187 {strides = array<i32>} : memref<8x128xf32, #tpu.memory_space<vmem>>, vector<8x128xf32>,
    return
  }
}

</mosaic_0001>

<llo_original>
// kernel: net_forward.1
$region0: #{net_forward.1}
  #allocation0 [shape = 'u32[]', space=smem, size = 0x4, offset = 0x4, fixed_abs, tag = 'smem constant byte address 0x4 - core index']
  #allocation1 [shape = 'u32[144,128]{1,0:T(1,128)}', space=vmem, size = 0x12000, scoped, tag = 'internal scratch']
  %s0 = inlined_call_operand.hbm [shape: f32[16,16], index: 0, kind: input, shape index: {}]
  %s1 = inlined_call_operand.vmem [shape: f32[16,32], index: 1, kind: input, shape index: {}]
  %s2 = inlined_call_operand.vmem [shape: f32[8,16], index: 2, kind: input, shape index: {}]
  %s3 = inlined_call_operand.vmem [shape: f32[5,32,32], index: 3, kind: input, shape index: {}]
  %s4 = inlined_call_operand.vmem [shape: f32[5,32,32], index: 4, kind: input, shape index: {}]
  %s5 = inlined_call_operand.vmem [shape: f32[5,8,32], index: 5, kind: input, shape index: {}]
  %s6 = inlined_call_operand.vmem [shape: f32[5,32,32], index: 6, kind: input, shape index: {}]
  %s7 = inlined_call_operand.vmem [shape: f32[32,128], index: 7, kind: input, shape index: {}]
  %s8 = inlined_call_operand.vmem [shape: f32[1,128], index: 8, kind: input, shape index: {}]
  %s9 = inlined_call_operand.vmem [shape: f32[8,128], index: 9, kind: output, shape index: {}]
  %s10 = sld [smem:[#allocation0]]
  $region50: #{net_forward.1} parent=0
    _
  %s12 = ssub.s32 1, %s10
  %s13 = scalar_select 0, %s12, %s10
  $region1: #{net_forward.1} parent=0
    #allocation2 [shape = 'u8[8192]{0}', space=vmem, size = 0x2000, scoped, tag = 'input window, operand 0, single buffered']
    #allocation3 [shape = 's32[1]{0}', space=sflag, size = 0x4, scoped, tag = 'scoped memory for net_forward.1']
    %14 = vsyncpa [#allocation3], 0
    // Predicated region
    $region2: #{net_forward.1} parent=1 // pred_check
      _
    $region3: #{net_forward.1} parent=1 // pred_check_branch
      %16 = sbr.rel (0) target = $region5
    $region4: #{net_forward.1} parent=1 // pred_region
      %s18 = ssub.s32 256, 256
      %19 = vsyncadd [#allocation3], %s18
      %s20 = sshll.u32 [#allocation2], 4
      %s21 = int_to_ptr.vmem [resolvable:$true] %s20
      %26 = dma.hbm_to_vmem [thread:$0]  %s0, 256, %s21, [#allocation3], 128, 128, 8
    $region5: #{net_forward.1} parent=1 // pred_fallthru
      _
    // Predicated region
    $region6: #{net_forward.1} parent=1 // pred_check
      _
    $region7: #{net_forward.1} parent=1 // pred_check_branch
      %28 = sbr.rel (0) target = $region9
    $region8: #{net_forward.1} parent=1 // pred_region
      _
    $region9: #{net_forward.1} parent=1 // pred_fallthru
      _
    // Predicated region
    $region10: #{net_forward.1} parent=1 // pred_check
      _
    $region11: #{net_forward.1} parent=1 // pred_check_branch
      %30 = sbr.rel (0) target = $region13
    $region12: #{net_forward.1} parent=1 // pred_region
      _
    $region13: #{net_forward.1} parent=1 // pred_fallthru
      _
    // Predicated region
    $region14: #{net_forward.1} parent=1 // pred_check
      _
    $region15: #{net_forward.1} parent=1 // pred_check_branch
      %32 = sbr.rel (0) target = $region17
    $region16: #{net_forward.1} parent=1 // pred_region
      _
    $region17: #{net_forward.1} parent=1 // pred_fallthru
      _
    // Predicated region
    $region18: #{net_forward.1} parent=1 // pred_check
      _
    $region19: #{net_forward.1} parent=1 // pred_check_branch
      %34 = sbr.rel (0) target = $region21
    $region20: #{net_forward.1} parent=1 // pred_region
      _
    $region21: #{net_forward.1} parent=1 // pred_fallthru
      _
    // Predicated region
    $region22: #{net_forward.1} parent=1 // pred_check
      _
    $region23: #{net_forward.1} parent=1 // pred_check_branch
      %36 = sbr.rel (0) target = $region25
    $region24: #{net_forward.1} parent=1 // pred_region
      _
    $region25: #{net_forward.1} parent=1 // pred_fallthru
      _
    // Predicated region
    $region26: #{net_forward.1} parent=1 // pred_check
      _
    $region27: #{net_forward.1} parent=1 // pred_check_branch
      %38 = sbr.rel (0) target = $region29
    $region28: #{net_forward.1} parent=1 // pred_region
      _
    $region29: #{net_forward.1} parent=1 // pred_fallthru
      _
    // Predicated region
    $region30: #{net_forward.1} parent=1 // pred_check
      _
    $region31: #{net_forward.1} parent=1 // pred_check_branch
      %40 = sbr.rel (0) target = $region33
    $region32: #{net_forward.1} parent=1 // pred_region
      _
    $region33: #{net_forward.1} parent=1 // pred_fallthru
      _
    // Predicated region
    $region34: #{net_forward.1} parent=1 // pred_check
      _
    $region35: #{net_forward.1} parent=1 // pred_check_branch
      %42 = sbr.rel (0) target = $region37
    $region36: #{net_forward.1} parent=1 // pred_region
      _
    $region37: #{net_forward.1} parent=1 // pred_fallthru
      _
    // Predicated region
    $region38: #{net_forward.1} parent=1 // pred_check
      _
    $region39: #{net_forward.1} parent=1 // pred_check_branch
      %44 = sbr.rel (0) target = $region41
    $region40: #{net_forward.1} parent=1 // pred_region
      %45 = dma.done [#allocation3], 256
    $region41: #{net_forward.1} parent=1 // pred_fallthru
      _
    %v46 = vld [vmem:[#allocation2] sm:$0xff]
    %v47 = vld [vmem:[#allocation2 + $0x8] sm:$0xff]
    %v48 = vld [vmem:[%s2] sm:$0xff]
    %v49 = vld [vmem:[%s1] sm:$0xff]
    %v50 = vld [vmem:[%s1 + $0x8] sm:$0xff]
    %v51 = vld [vmem:[%s5] sm:$0xff]
    %vm52 = vcmask 130048
    %v54 = vsel %vm52, %v46, 0
    %v57 = vsel %vm52, %v47, 0
    %59 = vmatprep.subr.mxu0 0.0
    %60 = vmatpush1.msra.mxu0 0.0
    %61 = vmatprep.subr.mxu0 0.0
    %62 = vmatpush1.msra.mxu0 0.0
    %63 = vmatprep.subr.mxu0 0.0
    %64 = vmatpush1.msra.mxu0 0.0
    %65 = vmatprep.subr.mxu0 0.0
    %66 = vmatpush1.msra.mxu0 0.0
    %67 = vmatprep.subr.mxu0 0.0
    %68 = vmatpush1.msra.mxu0 0.0
    %69 = vmatprep.subr.mxu0 0.0
    %70 = vmatpush1.msra.mxu0 0.0
    %71 = vmatprep.subr.mxu0 0.0
    %72 = vmatpush1.msra.mxu0 0.0
    %73 = vmatprep.subr.mxu0 0.0
    %74 = vmatpush1.msra.mxu0 0.0
    %75 = vmatprep.subr.mxu0 0.0
    %76 = vmatpush1.msra.mxu0 0.0
    %77 = vmatprep.subr.mxu0 0.0
    %78 = vmatpush1.msra.mxu0 0.0
    %79 = vmatprep.subr.mxu0 0.0
    %80 = vmatpush1.msra.mxu0 0.0
    %81 = vmatprep.subr.mxu0 0.0
    %82 = vmatpush1.msra.mxu0 0.0
    %83 = vmatprep.subr.mxu0 0.0
    %84 = vmatpush1.msra.mxu0 0.0
    %85 = vmatprep.subr.mxu0 0.0
    %86 = vmatpush1.msra.mxu0 0.0
    %87 = vmatprep.subr.mxu0 0.0
    %88 = vmatpush1.msra.mxu0 %v50
    %89 = vmatprep.subr.mxu0 0.0
    %90 = vmatpush1.msra.mxu0 %v49
    %91 = vmatprep.subr.mxu0 0.0
    %92 = vmatpush2.msra.mxu0 0.0
    %93 = vmatprep.subr.mxu0 0.0
    %94 = vmatpush2.msra.mxu0 0.0
    %95 = vmatprep.subr.mxu0 0.0
    %96 = vmatpush2.msra.mxu0 0.0
    %97 = vmatprep.subr.mxu0 0.0
    %98 = vmatpush2.msra.mxu0 0.0
    %99 = vmatprep.subr.mxu0 0.0
    %100 = vmatpush2.msra.mxu0 0.0
    %101 = vmatprep.subr.mxu0 0.0
    %102 = vmatpush2.msra.mxu0 0.0
    %103 = vmatprep.subr.mxu0 0.0
    %104 = vmatpush2.msra.mxu0 0.0
    %105 = vmatprep.subr.mxu0 0.0
    %106 = vmatpush2.msra.mxu0 0.0
    %107 = vmatprep.subr.mxu0 0.0
    %108 = vmatpush2.msra.mxu0 0.0
    %109 = vmatprep.subr.mxu0 0.0
    %110 = vmatpush2.msra.mxu0 0.0
    %111 = vmatprep.subr.mxu0 0.0
    %112 = vmatpush2.msra.mxu0 0.0
    %113 = vmatprep.subr.mxu0 0.0
    %114 = vmatpush2.msra.mxu0 0.0
    %115 = vmatprep.subr.mxu0 0.0
    %116 = vmatpush2.msra.mxu0 0.0
    %117 = vmatprep.subr.mxu0 0.0
    %118 = vmatpush2.msra.mxu0 0.0
    %119 = vmatprep.subr.mxu0 0.0
    %120 = vmatpush2.msra.mxu0 0.0
    %121 = vmatprep.subr.mxu0 0.0
    %122 = vmatpush2.msra.mxu0 0.0
    %123 = vmatprep.mubr.f32.mxu0 0.0
    %124 = vmatmul.mubr.f32.gmra.mxu0 %v54
    %v125 = vpop.f32.mrf.mxu0
    %v126 = vadd.f32 0.0, %v125
    %v127 = vpop.f32.mrf.mxu0
    %128 = vmatprep.mubr.f32.mxu0 0.0
    %129 = vmatmul.mubr.f32.gmra.mxu0 %v57
    %v130 = vpop.f32.mrf.mxu0
    %v131 = vadd.f32 0.0, %v130
    %v132 = vpop.f32.mrf.mxu0
    %133 = vdwg.mxu0
    %v134 = vld [vmem:[%s3] sm:$0xff]
    %v135 = vld [vmem:[%s3 + $0x8] sm:$0xff]
    %v136 = vld [vmem:[%s3 + $0x10] sm:$0xff]
    %v137 = vld [vmem:[%s3 + $0x18] sm:$0xff]
    %v138 = vlaneseq
    %v139 = vshrl.u32 %v138, 7
    %v140 = vsub.s32 0, %v139
    %v141 = vrot.slane %v51, %v140
    %vm142 = vcmask 261120
    %v144 = vsel %vm142, %v126, 0
    %v147 = vsel %vm142, %v131, 0
    %149 = vmatprep.subr.mxu0 0.0
    %150 = vmatpush1.msra.mxu0 0.0
    %151 = vmatprep.subr.mxu0 0.0
    %152 = vmatpush1.msra.mxu0 0.0
    %153 = vmatprep.subr.mxu0 0.0
    %154 = vmatpush1.msra.mxu0 0.0
    %155 = vmatprep.subr.mxu0 0.0
    %156 = vmatpush1.msra.mxu0 0.0
    %157 = vmatprep.subr.mxu0 0.0
    %158 = vmatpush1.msra.mxu0 0.0
    %159 = vmatprep.subr.mxu0 0.0
    %160 = vmatpush1.msra.mxu0 0.0
    %161 = vmatprep.subr.mxu0 0.0
    %162 = vmatpush1.msra.mxu0 0.0
    %163 = vmatprep.subr.mxu0 0.0
    %164 = vmatpush1.msra.mxu0 0.0
    %165 = vmatprep.subr.mxu0 0.0
    %166 = vmatpush1.msra.mxu0 0.0
    %167 = vmatprep.subr.mxu0 0.0
    %168 = vmatpush1.msra.mxu0 0.0
    %169 = vmatprep.subr.mxu0 0.0
    %170 = vmatpush1.msra.mxu0 0.0
    %171 = vmatprep.subr.mxu0 0.0
    %172 = vmatpush1.msra.mxu0 0.0
    %173 = vmatprep.subr.mxu0 0.0
    %174 = vmatpush1.msra.mxu0 %v137
    %175 = vmatprep.subr.mxu0 0.0
    %176 = vmatpush1.msra.mxu0 %v136
    %177 = vmatprep.subr.mxu0 0.0
    %178 = vmatpush1.msra.mxu0 %v135
    %179 = vmatprep.subr.mxu0 0.0
    %180 = vmatpush1.msra.mxu0 %v134
    %181 = vmatprep.subr.mxu0 0.0
    %182 = vmatpush2.msra.mxu0 0.0
    %183 = vmatprep.subr.mxu0 0.0
    %184 = vmatpush2.msra.mxu0 0.0
    %185 = vmatprep.subr.mxu0 0.0
    %186 = vmatpush2.msra.mxu0 0.0
    %187 = vmatprep.subr.mxu0 0.0
    %188 = vmatpush2.msra.mxu0 0.0
    %189 = vmatprep.subr.mxu0 0.0
    %190 = vmatpush2.msra.mxu0 0.0
    %191 = vmatprep.subr.mxu0 0.0
    %192 = vmatpush2.msra.mxu0 0.0
    %193 = vmatprep.subr.mxu0 0.0
    %194 = vmatpush2.msra.mxu0 0.0
    %195 = vmatprep.subr.mxu0 0.0
    %196 = vmatpush2.msra.mxu0 0.0
    %197 = vmatprep.subr.mxu0 0.0
    %198 = vmatpush2.msra.mxu0 0.0
    %199 = vmatprep.subr.mxu0 0.0
    %200 = vmatpush2.msra.mxu0 0.0
    %201 = vmatprep.subr.mxu0 0.0
    %202 = vmatpush2.msra.mxu0 0.0
    %203 = vmatprep.subr.mxu0 0.0
    %204 = vmatpush2.msra.mxu0 0.0
    %205 = vmatprep.subr.mxu0 0.0
    %206 = vmatpush2.msra.mxu0 0.0
    %207 = vmatprep.subr.mxu0 0.0
    %208 = vmatpush2.msra.mxu0 0.0
    %209 = vmatprep.subr.mxu0 0.0
    %210 = vmatpush2.msra.mxu0 0.0
    %211 = vmatprep.subr.mxu0 0.0
    %212 = vmatpush2.msra.mxu0 0.0
    %213 = vmatprep.mubr.f32.mxu0 0.0
    %214 = vmatmul.mubr.f32.gmra.mxu0 %v144
    %v215 = vpop.f32.mrf.mxu0
    %v216 = vadd.f32 %v141, %v215
    %v217 = vpop.f32.mrf.mxu0
    %218 = vmatprep.mubr.f32.mxu0 0.0
    %219 = vmatmul.mubr.f32.gmra.mxu0 %v147
    %v220 = vpop.f32.mrf.mxu0
    %v221 = vadd.f32 %v141, %v220
    %v222 = vpop.f32.mrf.mxu0
    %223 = vdwg.mxu0
    %v224 = vmax.f32 %v216, 0.0
    %v225 = vmax.f32 %v221, 0.0
    %v226 = vld [vmem:[%s4] sm:$0xff]
    %v227 = vld [vmem:[%s4 + $0x8] sm:$0xff]
    %v228 = vld [vmem:[%s4 + $0x10] sm:$0xff]
    %v229 = vld [vmem:[%s4 + $0x18] sm:$0xff]
    %v230 = vlaneseq
    %v231 = vshrl.u32 %v230, 7
    %v232 = vsub.s32 1, %v231
    %v233 = vrot.slane %v51, %v232
    %v235 = vsel %vm142, %v224, 0
    %v238 = vsel %vm142, %v225, 0
    %240 = vmatprep.subr.mxu0 0.0
    %241 = vmatpush1.msra.mxu0 0.0
    %242 = vmatprep.subr.mxu0 0.0
    %243 = vmatpush1.msra.mxu0 0.0
    %244 = vmatprep.subr.mxu0 0.0
    %245 = vmatpush1.msra.mxu0 0.0
    %246 = vmatprep.subr.mxu0 0.0
    %247 = vmatpush1.msra.mxu0 0.0
    %248 = vmatprep.subr.mxu0 0.0
    %249 = vmatpush1.msra.mxu0 0.0
    %250 = vmatprep.subr.mxu0 0.0
    %251 = vmatpush1.msra.mxu0 0.0
    %252 = vmatprep.subr.mxu0 0.0
    %253 = vmatpush1.msra.mxu0 0.0
    %254 = vmatprep.subr.mxu0 0.0
    %255 = vmatpush1.msra.mxu0 0.0
    %256 = vmatprep.subr.mxu0 0.0
    %257 = vmatpush1.msra.mxu0 0.0
    %258 = vmatprep.subr.mxu0 0.0
    %259 = vmatpush1.msra.mxu0 0.0
    %260 = vmatprep.subr.mxu0 0.0
    %261 = vmatpush1.msra.mxu0 0.0
    %262 = vmatprep.subr.mxu0 0.0
    %263 = vmatpush1.msra.mxu0 0.0
    %264 = vmatprep.subr.mxu0 0.0
    %265 = vmatpush1.msra.mxu0 %v229
    %266 = vmatprep.subr.mxu0 0.0
    %267 = vmatpush1.msra.mxu0 %v228
    %268 = vmatprep.subr.mxu0 0.0
    %269 = vmatpush1.msra.mxu0 %v227
    %270 = vmatprep.subr.mxu0 0.0
    %271 = vmatpush1.msra.mxu0 %v226
    %272 = vmatprep.subr.mxu0 0.0
    %273 = vmatpush2.msra.mxu0 0.0
    %274 = vmatprep.subr.mxu0 0.0
    %275 = vmatpush2.msra.mxu0 0.0
    %276 = vmatprep.subr.mxu0 0.0
    %277 = vmatpush2.msra.mxu0 0.0
    %278 = vmatprep.subr.mxu0 0.0
    %279 = vmatpush2.msra.mxu0 0.0
    %280 = vmatprep.subr.mxu0 0.0
    %281 = vmatpush2.msra.mxu0 0.0
    %282 = vmatprep.subr.mxu0 0.0
    %283 = vmatpush2.msra.mxu0 0.0
    %284 = vmatprep.subr.mxu0 0.0
    %285 = vmatpush2.msra.mxu0 0.0
    %286 = vmatprep.subr.mxu0 0.0
    %287 = vmatpush2.msra.mxu0 0.0
    %288 = vmatprep.subr.mxu0 0.0
    %289 = vmatpush2.msra.mxu0 0.0
    %290 = vmatprep.subr.mxu0 0.0
    %291 = vmatpush2.msra.mxu0 0.0
    %292 = vmatprep.subr.mxu0 0.0
    %293 = vmatpush2.msra.mxu0 0.0
    %294 = vmatprep.subr.mxu0 0.0
    %295 = vmatpush2.msra.mxu0 0.0
    %296 = vmatprep.subr.mxu0 0.0
    %297 = vmatpush2.msra.mxu0 0.0
    %298 = vmatprep.subr.mxu0 0.0
    %299 = vmatpush2.msra.mxu0 0.0
    %300 = vmatprep.subr.mxu0 0.0
    %301 = vmatpush2.msra.mxu0 0.0
    %302 = vmatprep.subr.mxu0 0.0
    %303 = vmatpush2.msra.mxu0 0.0
    %304 = vmatprep.mubr.f32.mxu0 0.0
    %305 = vmatmul.mubr.f32.gmra.mxu0 %v235
    %v306 = vpop.f32.mrf.mxu0
    %v307 = vadd.f32 %v233, %v306
    %v308 = vpop.f32.mrf.mxu0
    %309 = vmatprep.mubr.f32.mxu0 0.0
    %310 = vmatmul.mubr.f32.gmra.mxu0 %v238
    %v311 = vpop.f32.mrf.mxu0
    %v312 = vadd.f32 %v233, %v311
    %v313 = vpop.f32.mrf.mxu0
    %314 = vdwg.mxu0
    %v315 = vmax.f32 %v307, 0.0
    %v316 = vmax.f32 %v312, 0.0
    %v317 = vlaneseq
    %v318 = vshrl.u32 %v317, 7
    %v319 = vsub.s32 2, %v318
    %v320 = vrot.slane %v51, %v319
    %v321 = vmul.f32 %v315, %v320
    %v322 = vmul.f32 %v316, %v320
    %v323 = vlaneseq
    %v324 = vshrl.u32 %v323, 7
    %v325 = vsub.s32 3, %v324
    %v326 = vrot.slane %v51, %v325
    %v327 = vadd.f32 %v321, %v326
    %v328 = vadd.f32 %v322, %v326
    %v330 = vsel %vm52, %v48, 0
    %332 = vmatprep.subr.mxu0 0.0
    %333 = vmatpush1.msra.mxu0 0.0
    %334 = vmatprep.subr.mxu0 0.0
    %335 = vmatpush1.msra.mxu0 0.0
    %336 = vmatprep.subr.mxu0 0.0
    %337 = vmatpush1.msra.mxu0 0.0
    %338 = vmatprep.subr.mxu0 0.0
    %339 = vmatpush1.msra.mxu0 0.0
    %340 = vmatprep.subr.mxu0 0.0
    %341 = vmatpush1.msra.mxu0 0.0
    %342 = vmatprep.subr.mxu0 0.0
    %343 = vmatpush1.msra.mxu0 0.0
    %344 = vmatprep.subr.mxu0 0.0
    %345 = vmatpush1.msra.mxu0 0.0
    %346 = vmatprep.subr.mxu0 0.0
    %347 = vmatpush1.msra.mxu0 0.0
    %348 = vmatprep.subr.mxu0 0.0
    %349 = vmatpush1.msra.mxu0 0.0
    %350 = vmatprep.subr.mxu0 0.0
    %351 = vmatpush1.msra.mxu0 0.0
    %352 = vmatprep.subr.mxu0 0.0
    %353 = vmatpush1.msra.mxu0 0.0
    %354 = vmatprep.subr.mxu0 0.0
    %355 = vmatpush1.msra.mxu0 0.0
    %356 = vmatprep.subr.mxu0 0.0
    %357 = vmatpush1.msra.mxu0 0.0
    %358 = vmatprep.subr.mxu0 0.0
    %359 = vmatpush1.msra.mxu0 0.0
    %360 = vmatprep.subr.mxu0 0.0
    %361 = vmatpush1.msra.mxu0 %v328
    %362 = vmatprep.subr.mxu0 0.0
    %363 = vmatpush1.msra.mxu0 %v327
    %364 = vmatprep.subr.mxu0 0.0
    %365 = vmatpush2.msra.mxu0 0.0
    %366 = vmatprep.subr.mxu0 0.0
    %367 = vmatpush2.msra.mxu0 0.0
    %368 = vmatprep.subr.mxu0 0.0
    %369 = vmatpush2.msra.mxu0 0.0
    %370 = vmatprep.subr.mxu0 0.0
    %371 = vmatpush2.msra.mxu0 0.0
    %372 = vmatprep.subr.mxu0 0.0
    %373 = vmatpush2.msra.mxu0 0.0
    %374 = vmatprep.subr.mxu0 0.0
    %375 = vmatpush2.msra.mxu0 0.0
    %376 = vmatprep.subr.mxu0 0.0
    %377 = vmatpush2.msra.mxu0 0.0
    %378 = vmatprep.subr.mxu0 0.0
    %379 = vmatpush2.msra.mxu0 0.0
    %380 = vmatprep.subr.mxu0 0.0
    %381 = vmatpush2.msra.mxu0 0.0
    %382 = vmatprep.subr.mxu0 0.0
    %383 = vmatpush2.msra.mxu0 0.0
    %384 = vmatprep.subr.mxu0 0.0
    %385 = vmatpush2.msra.mxu0 0.0
    %386 = vmatprep.subr.mxu0 0.0
    %387 = vmatpush2.msra.mxu0 0.0
    %388 = vmatprep.subr.mxu0 0.0
    %389 = vmatpush2.msra.mxu0 0.0
    %390 = vmatprep.subr.mxu0 0.0
    %391 = vmatpush2.msra.mxu0 0.0
    %392 = vmatprep.subr.mxu0 0.0
    %393 = vmatpush2.msra.mxu0 0.0
    %394 = vmatprep.subr.mxu0 0.0
    %395 = vmatpush2.msra.mxu0 0.0
    %396 = vmatprep.mubr.f32.mxu0 0.0
    %397 = vmatmul.mubr.f32.gmra.mxu0 %v330
    %v398 = vpop.f32.mrf.mxu0
    %v399 = vadd.f32 0.0, %v398
    %v400 = vpop.f32.mrf.mxu0
    %401 = vdwg.mxu0
    %v402 = vld [vmem:[%s6] sm:$0xff]
    %v403 = vld [vmem:[%s6 + $0x8] sm:$0xff]
    %v404 = vld [vmem:[%s6 + $0x10] sm:$0xff]
    %v405 = vld [vmem:[%s6 + $0x18] sm:$0xff]
    %v406 = vlaneseq
    %v407 = vshrl.u32 %v406, 7
    %v408 = vsub.s32 4, %v407
    %v409 = vrot.slane %v51, %v408
    %v411 = vsel %vm142, %v399, 0
    %413 = vmatprep.subr.mxu0 0.0
    %414 = vmatpush1.msra.mxu0 0.0
    %415 = vmatprep.subr.mxu0 0.0
    %416 = vmatpush1.msra.mxu0 0.0
    %417 = vmatprep.subr.mxu0 0.0
    %418 = vmatpush1.msra.mxu0 0.0
    %419 = vmatprep.subr.mxu0 0.0
    %420 = vmatpush1.msra.mxu0 0.0
    %421 = vmatprep.subr.mxu0 0.0
    %422 = vmatpush1.msra.mxu0 0.0
    %423 = vmatprep.subr.mxu0 0.0
    %424 = vmatpush1.msra.mxu0 0.0
    %425 = vmatprep.subr.mxu0 0.0
    %426 = vmatpush1.msra.mxu0 0.0
    %427 = vmatprep.subr.mxu0 0.0
    %428 = vmatpush1.msra.mxu0 0.0
    %429 = vmatprep.subr.mxu0 0.0
    %430 = vmatpush1.msra.mxu0 0.0
    %431 = vmatprep.subr.mxu0 0.0
    %432 = vmatpush1.msra.mxu0 0.0
    %433 = vmatprep.subr.mxu0 0.0
    %434 = vmatpush1.msra.mxu0 0.0
    %435 = vmatprep.subr.mxu0 0.0
    %436 = vmatpush1.msra.mxu0 0.0
    %437 = vmatprep.subr.mxu0 0.0
    %438 = vmatpush1.msra.mxu0 %v405
    %439 = vmatprep.subr.mxu0 0.0
    %440 = vmatpush1.msra.mxu0 %v404
    %441 = vmatprep.subr.mxu0 0.0
    %442 = vmatpush1.msra.mxu0 %v403
    %443 = vmatprep.subr.mxu0 0.0
    %444 = vmatpush1.msra.mxu0 %v402
    %445 = vmatprep.subr.mxu0 0.0
    %446 = vmatpush2.msra.mxu0 0.0
    %447 = vmatprep.subr.mxu0 0.0
    %448 = vmatpush2.msra.mxu0 0.0
    %449 = vmatprep.subr.mxu0 0.0
    %450 = vmatpush2.msra.mxu0 0.0
    %451 = vmatprep.subr.mxu0 0.0
    %452 = vmatpush2.msra.mxu0 0.0
    %453 = vmatprep.subr.mxu0 0.0
    %454 = vmatpush2.msra.mxu0 0.0
    %455 = vmatprep.subr.mxu0 0.0
    %456 = vmatpush2.msra.mxu0 0.0
    %457 = vmatprep.subr.mxu0 0.0
    %458 = vmatpush2.msra.mxu0 0.0
    %459 = vmatprep.subr.mxu0 0.0
    %460 = vmatpush2.msra.mxu0 0.0
    %461 = vmatprep.subr.mxu0 0.0
    %462 = vmatpush2.msra.mxu0 0.0
    %463 = vmatprep.subr.mxu0 0.0
    %464 = vmatpush2.msra.mxu0 0.0
    %465 = vmatprep.subr.mxu0 0.0
    %466 = vmatpush2.msra.mxu0 0.0
    %467 = vmatprep.subr.mxu0 0.0
    %468 = vmatpush2.msra.mxu0 0.0
    %469 = vmatprep.subr.mxu0 0.0
    %470 = vmatpush2.msra.mxu0 0.0
    %471 = vmatprep.subr.mxu0 0.0
    %472 = vmatpush2.msra.mxu0 0.0
    %473 = vmatprep.subr.mxu0 0.0
    %474 = vmatpush2.msra.mxu0 0.0
    %475 = vmatprep.subr.mxu0 0.0
    %476 = vmatpush2.msra.mxu0 0.0
    %477 = vmatprep.mubr.f32.mxu0 0.0
    %478 = vmatmul.mubr.f32.gmra.mxu0 %v411
    %v479 = vpop.f32.mrf.mxu0
    %v480 = vadd.f32 %v409, %v479
    %v481 = vpop.f32.mrf.mxu0
    %482 = vdwg.mxu0
    %v483 = vmax.f32 %v480, 0.0
    %v484 = vadd.f32 %v483, 0.0
    %s485 = scalar_lea.vmem %s5, 8
    %v486 = vld [vmem:[%s485] sm:$0xff]
    %487 = vmatprep.subr.mxu0 0.0
    %488 = vmatpush1.msra.mxu0 0.0
    %489 = vmatprep.subr.mxu0 0.0
    %490 = vmatpush1.msra.mxu0 0.0
    %491 = vmatprep.subr.mxu0 0.0
    %492 = vmatpush1.msra.mxu0 0.0
    %493 = vmatprep.subr.mxu0 0.0
    %494 = vmatpush1.msra.mxu0 0.0
    %495 = vmatprep.subr.mxu0 0.0
    %496 = vmatpush1.msra.mxu0 0.0
    %497 = vmatprep.subr.mxu0 0.0
    %498 = vmatpush1.msra.mxu0 0.0
    %499 = vmatprep.subr.mxu0 0.0
    %500 = vmatpush1.msra.mxu0 0.0
    %501 = vmatprep.subr.mxu0 0.0
    %502 = vmatpush1.msra.mxu0 0.0
    %503 = vmatprep.subr.mxu0 0.0
    %504 = vmatpush1.msra.mxu0 0.0
    %505 = vmatprep.subr.mxu0 0.0
    %506 = vmatpush1.msra.mxu0 0.0
    %507 = vmatprep.subr.mxu0 0.0
    %508 = vmatpush1.msra.mxu0 0.0
    %509 = vmatprep.subr.mxu0 0.0
    %510 = vmatpush1.msra.mxu0 0.0
    %511 = vmatprep.subr.mxu0 0.0
    %512 = vmatpush1.msra.mxu0 0.0
    %513 = vmatprep.subr.mxu0 0.0
    %514 = vmatpush1.msra.mxu0 0.0
    %515 = vmatprep.subr.mxu0 0.0
    %516 = vmatpush1.msra.mxu0 %v328
    %517 = vmatprep.subr.mxu0 0.0
    %518 = vmatpush1.msra.mxu0 %v327
    %519 = vmatprep.subr.mxu0 0.0
    %520 = vmatpush2.msra.mxu0 0.0
    %521 = vmatprep.subr.mxu0 0.0
    %522 = vmatpush2.msra.mxu0 0.0
    %523 = vmatprep.subr.mxu0 0.0
    %524 = vmatpush2.msra.mxu0 0.0
    %525 = vmatprep.subr.mxu0 0.0
    %526 = vmatpush2.msra.mxu0 0.0
    %527 = vmatprep.subr.mxu0 0.0
    %528 = vmatpush2.msra.mxu0 0.0
    %529 = vmatprep.subr.mxu0 0.0
    %530 = vmatpush2.msra.mxu0 0.0
    %531 = vmatprep.subr.mxu0 0.0
    %532 = vmatpush2.msra.mxu0 0.0
    %533 = vmatprep.subr.mxu0 0.0
    %534 = vmatpush2.msra.mxu0 0.0
    %535 = vmatprep.subr.mxu0 0.0
    %536 = vmatpush2.msra.mxu0 0.0
    %537 = vmatprep.subr.mxu0 0.0
    %538 = vmatpush2.msra.mxu0 0.0
    %539 = vmatprep.subr.mxu0 0.0
    %540 = vmatpush2.msra.mxu0 0.0
    %541 = vmatprep.subr.mxu0 0.0
    %542 = vmatpush2.msra.mxu0 0.0
    %543 = vmatprep.subr.mxu0 0.0
    %544 = vmatpush2.msra.mxu0 0.0
    %545 = vmatprep.subr.mxu0 0.0
    %546 = vmatpush2.msra.mxu0 0.0
    %547 = vmatprep.subr.mxu0 0.0
    %548 = vmatpush2.msra.mxu0 0.0
    %549 = vmatprep.subr.mxu0 0.0
    %550 = vmatpush2.msra.mxu0 0.0
    %551 = vmatprep.mubr.f32.mxu0 0.0
    %552 = vmatmul.mubr.f32.gmra.mxu0 %v54
    %v553 = vpop.f32.mrf.mxu0
    %v554 = vadd.f32 0.0, %v553
    %v555 = vpop.f32.mrf.mxu0
    %556 = vmatprep.mubr.f32.mxu0 0.0
    %557 = vmatmul.mubr.f32.gmra.mxu0 %v57
    %v558 = vpop.f32.mrf.mxu0
    %v559 = vadd.f32 0.0, %v558
    %v560 = vpop.f32.mrf.mxu0
    %561 = vdwg.mxu0
    %s562 = scalar_lea.vmem %s3, 32
    %v563 = vld [vmem:[%s562] sm:$0xff]
    %v564 = vld [vmem:[%s562 + $0x8] sm:$0xff]
    %v565 = vld [vmem:[%s562 + $0x10] sm:$0xff]
    %v566 = vld [vmem:[%s562 + $0x18] sm:$0xff]
    %v567 = vlaneseq
    %v568 = vshrl.u32 %v567, 7
    %v569 = vsub.s32 0, %v568
    %v570 = vrot.slane %v486, %v569
    %v572 = vsel %vm142, %v554, 0
    %v575 = vsel %vm142, %v559, 0
    %577 = vmatprep.subr.mxu0 0.0
    %578 = vmatpush1.msra.mxu0 0.0
    %579 = vmatprep.subr.mxu0 0.0
    %580 = vmatpush1.msra.mxu0 0.0
    %581 = vmatprep.subr.mxu0 0.0
    %582 = vmatpush1.msra.mxu0 0.0
    %583 = vmatprep.subr.mxu0 0.0
    %584 = vmatpush1.msra.mxu0 0.0
    %585 = vmatprep.subr.mxu0 0.0
    %586 = vmatpush1.msra.mxu0 0.0
    %587 = vmatprep.subr.mxu0 0.0
    %588 = vmatpush1.msra.mxu0 0.0
    %589 = vmatprep.subr.mxu0 0.0
    %590 = vmatpush1.msra.mxu0 0.0
    %591 = vmatprep.subr.mxu0 0.0
    %592 = vmatpush1.msra.mxu0 0.0
    %593 = vmatprep.subr.mxu0 0.0
    %594 = vmatpush1.msra.mxu0 0.0
    %595 = vmatprep.subr.mxu0 0.0
    %596 = vmatpush1.msra.mxu0 0.0
    %597 = vmatprep.subr.mxu0 0.0
    %598 = vmatpush1.msra.mxu0 0.0
    %599 = vmatprep.subr.mxu0 0.0
    %600 = vmatpush1.msra.mxu0 0.0
    %601 = vmatprep.subr.mxu0 0.0
    %602 = vmatpush1.msra.mxu0 %v566
    %603 = vmatprep.subr.mxu0 0.0
    %604 = vmatpush1.msra.mxu0 %v565
    %605 = vmatprep.subr.mxu0 0.0
    %606 = vmatpush1.msra.mxu0 %v564
    %607 = vmatprep.subr.mxu0 0.0
    %608 = vmatpush1.msra.mxu0 %v563
    %609 = vmatprep.subr.mxu0 0.0
    %610 = vmatpush2.msra.mxu0 0.0
    %611 = vmatprep.subr.mxu0 0.0
    %612 = vmatpush2.msra.mxu0 0.0
    %613 = vmatprep.subr.mxu0 0.0
    %614 = vmatpush2.msra.mxu0 0.0
    %615 = vmatprep.subr.mxu0 0.0
    %616 = vmatpush2.msra.mxu0 0.0
    %617 = vmatprep.subr.mxu0 0.0
    %618 = vmatpush2.msra.mxu0 0.0
    %619 = vmatprep.subr.mxu0 0.0
    %620 = vmatpush2.msra.mxu0 0.0
    %621 = vmatprep.subr.mxu0 0.0
    %622 = vmatpush2.msra.mxu0 0.0
    %623 = vmatprep.subr.mxu0 0.0
    %624 = vmatpush2.msra.mxu0 0.0
    %625 = vmatprep.subr.mxu0 0.0
    %626 = vmatpush2.msra.mxu0 0.0
    %627 = vmatprep.subr.mxu0 0.0
    %628 = vmatpush2.msra.mxu0 0.0
    %629 = vmatprep.subr.mxu0 0.0
    %630 = vmatpush2.msra.mxu0 0.0
    %631 = vmatprep.subr.mxu0 0.0
    %632 = vmatpush2.msra.mxu0 0.0
    %633 = vmatprep.subr.mxu0 0.0
    %634 = vmatpush2.msra.mxu0 0.0
    %635 = vmatprep.subr.mxu0 0.0
    %636 = vmatpush2.msra.mxu0 0.0
    %637 = vmatprep.subr.mxu0 0.0
    %638 = vmatpush2.msra.mxu0 0.0
    %639 = vmatprep.subr.mxu0 0.0
    %640 = vmatpush2.msra.mxu0 0.0
    %641 = vmatprep.mubr.f32.mxu0 0.0
    %642 = vmatmul.mubr.f32.gmra.mxu0 %v572
    %v643 = vpop.f32.mrf.mxu0
    %v644 = vadd.f32 %v570, %v643
    %v645 = vpop.f32.mrf.mxu0
    %646 = vmatprep.mubr.f32.mxu0 0.0
    %647 = vmatmul.mubr.f32.gmra.mxu0 %v575
    %v648 = vpop.f32.mrf.mxu0
    %v649 = vadd.f32 %v570, %v648
    %v650 = vpop.f32.mrf.mxu0
    %651 = vdwg.mxu0
    %v652 = vmax.f32 %v644, 0.0
    %v653 = vmax.f32 %v649, 0.0
    %s654 = scalar_lea.vmem %s4, 32
    %v655 = vld [vmem:[%s654] sm:$0xff]
    %v656 = vld [vmem:[%s654 + $0x8] sm:$0xff]
    %v657 = vld [vmem:[%s654 + $0x10] sm:$0xff]
    %v658 = vld [vmem:[%s654 + $0x18] sm:$0xff]
    %v659 = vlaneseq
    %v660 = vshrl.u32 %v659, 7
    %v661 = vsub.s32 1, %v660
    %v662 = vrot.slane %v486, %v661
    %v664 = vsel %vm142, %v652, 0
    %v667 = vsel %vm142, %v653, 0
    %669 = vmatprep.subr.mxu0 0.0
    %670 = vmatpush1.msra.mxu0 0.0
    %671 = vmatprep.subr.mxu0 0.0
    %672 = vmatpush1.msra.mxu0 0.0
    %673 = vmatprep.subr.mxu0 0.0
    %674 = vmatpush1.msra.mxu0 0.0
    %675 = vmatprep.subr.mxu0 0.0
    %676 = vmatpush1.msra.mxu0 0.0
    %677 = vmatprep.subr.mxu0 0.0
    %678 = vmatpush1.msra.mxu0 0.0
    %679 = vmatprep.subr.mxu0 0.0
    %680 = vmatpush1.msra.mxu0 0.0
    %681 = vmatprep.subr.mxu0 0.0
    %682 = vmatpush1.msra.mxu0 0.0
    %683 = vmatprep.subr.mxu0 0.0
    %684 = vmatpush1.msra.mxu0 0.0
    %685 = vmatprep.subr.mxu0 0.0
    %686 = vmatpush1.msra.mxu0 0.0
    %687 = vmatprep.subr.mxu0 0.0
    %688 = vmatpush1.msra.mxu0 0.0
    %689 = vmatprep.subr.mxu0 0.0
    %690 = vmatpush1.msra.mxu0 0.0
    %691 = vmatprep.subr.mxu0 0.0
    %692 = vmatpush1.msra.mxu0 0.0
    %693 = vmatprep.subr.mxu0 0.0
    %694 = vmatpush1.msra.mxu0 %v658
    %695 = vmatprep.subr.mxu0 0.0
    %696 = vmatpush1.msra.mxu0 %v657
    %697 = vmatprep.subr.mxu0 0.0
    %698 = vmatpush1.msra.mxu0 %v656
    %699 = vmatprep.subr.mxu0 0.0
    %700 = vmatpush1.msra.mxu0 %v655
    %701 = vmatprep.subr.mxu0 0.0
    %702 = vmatpush2.msra.mxu0 0.0
    %703 = vmatprep.subr.mxu0 0.0
    %704 = vmatpush2.msra.mxu0 0.0
    %705 = vmatprep.subr.mxu0 0.0
    %706 = vmatpush2.msra.mxu0 0.0
    %707 = vmatprep.subr.mxu0 0.0
    %708 = vmatpush2.msra.mxu0 0.0
    %709 = vmatprep.subr.mxu0 0.0
    %710 = vmatpush2.msra.mxu0 0.0
    %711 = vmatprep.subr.mxu0 0.0
    %712 = vmatpush2.msra.mxu0 0.0
    %713 = vmatprep.subr.mxu0 0.0
    %714 = vmatpush2.msra.mxu0 0.0
    %715 = vmatprep.subr.mxu0 0.0
    %716 = vmatpush2.msra.mxu0 0.0
    %717 = vmatprep.subr.mxu0 0.0
    %718 = vmatpush2.msra.mxu0 0.0
    %719 = vmatprep.subr.mxu0 0.0
    %720 = vmatpush2.msra.mxu0 0.0
    %721 = vmatprep.subr.mxu0 0.0
    %722 = vmatpush2.msra.mxu0 0.0
    %723 = vmatprep.subr.mxu0 0.0
    %724 = vmatpush2.msra.mxu0 0.0
    %725 = vmatprep.subr.mxu0 0.0
    %726 = vmatpush2.msra.mxu0 0.0
    %727 = vmatprep.subr.mxu0 0.0
    %728 = vmatpush2.msra.mxu0 0.0
    %729 = vmatprep.subr.mxu0 0.0
    %730 = vmatpush2.msra.mxu0 0.0
    %731 = vmatprep.subr.mxu0 0.0
    %732 = vmatpush2.msra.mxu0 0.0
    %733 = vmatprep.mubr.f32.mxu0 0.0
    %734 = vmatmul.mubr.f32.gmra.mxu0 %v664
    %v735 = vpop.f32.mrf.mxu0
    %v736 = vadd.f32 %v662, %v735
    %v737 = vpop.f32.mrf.mxu0
    %738 = vmatprep.mubr.f32.mxu0 0.0
    %739 = vmatmul.mubr.f32.gmra.mxu0 %v667
    %v740 = vpop.f32.mrf.mxu0
    %v741 = vadd.f32 %v662, %v740
    %v742 = vpop.f32.mrf.mxu0
    %743 = vdwg.mxu0
    %v744 = vmax.f32 %v736, 0.0
    %v745 = vmax.f32 %v741, 0.0
    %v746 = vlaneseq
    %v747 = vshrl.u32 %v746, 7
    %v748 = vsub.s32 2, %v747
    %v749 = vrot.slane %v486, %v748
    %v750 = vmul.f32 %v744, %v749
    %v751 = vmul.f32 %v745, %v749
    %v752 = vlaneseq
    %v753 = vshrl.u32 %v752, 7
    %v754 = vsub.s32 3, %v753
    %v755 = vrot.slane %v486, %v754
    %v756 = vadd.f32 %v750, %v755
    %v757 = vadd.f32 %v751, %v755
    %758 = vmatprep.subr.mxu0 0.0
    %759 = vmatpush1.msra.mxu0 0.0
    %760 = vmatprep.subr.mxu0 0.0
    %761 = vmatpush1.msra.mxu0 0.0
    %762 = vmatprep.subr.mxu0 0.0
    %763 = vmatpush1.msra.mxu0 0.0
    %764 = vmatprep.subr.mxu0 0.0
    %765 = vmatpush1.msra.mxu0 0.0
    %766 = vmatprep.subr.mxu0 0.0
    %767 = vmatpush1.msra.mxu0 0.0
    %768 = vmatprep.subr.mxu0 0.0
    %769 = vmatpush1.msra.mxu0 0.0
    %770 = vmatprep.subr.mxu0 0.0
    %771 = vmatpush1.msra.mxu0 0.0
    %772 = vmatprep.subr.mxu0 0.0
    %773 = vmatpush1.msra.mxu0 0.0
    %774 = vmatprep.subr.mxu0 0.0
    %775 = vmatpush1.msra.mxu0 0.0
    %776 = vmatprep.subr.mxu0 0.0
    %777 = vmatpush1.msra.mxu0 0.0
    %778 = vmatprep.subr.mxu0 0.0
    %779 = vmatpush1.msra.mxu0 0.0
    %780 = vmatprep.subr.mxu0 0.0
    %781 = vmatpush1.msra.mxu0 0.0
    %782 = vmatprep.subr.mxu0 0.0
    %783 = vmatpush1.msra.mxu0 0.0
    %784 = vmatprep.subr.mxu0 0.0
    %785 = vmatpush1.msra.mxu0 0.0
    %786 = vmatprep.subr.mxu0 0.0
    %787 = vmatpush1.msra.mxu0 %v757
    %788 = vmatprep.subr.mxu0 0.0
    %789 = vmatpush1.msra.mxu0 %v756
    %790 = vmatprep.subr.mxu0 0.0
    %791 = vmatpush2.msra.mxu0 0.0
    %792 = vmatprep.subr.mxu0 0.0
    %793 = vmatpush2.msra.mxu0 0.0
    %794 = vmatprep.subr.mxu0 0.0
    %795 = vmatpush2.msra.mxu0 0.0
    %796 = vmatprep.subr.mxu0 0.0
    %797 = vmatpush2.msra.mxu0 0.0
    %798 = vmatprep.subr.mxu0 0.0
    %799 = vmatpush2.msra.mxu0 0.0
    %800 = vmatprep.subr.mxu0 0.0
    %801 = vmatpush2.msra.mxu0 0.0
    %802 = vmatprep.subr.mxu0 0.0
    %803 = vmatpush2.msra.mxu0 0.0
    %804 = vmatprep.subr.mxu0 0.0
    %805 = vmatpush2.msra.mxu0 0.0
    %806 = vmatprep.subr.mxu0 0.0
    %807 = vmatpush2.msra.mxu0 0.0
    %808 = vmatprep.subr.mxu0 0.0
    %809 = vmatpush2.msra.mxu0 0.0
    %810 = vmatprep.subr.mxu0 0.0
    %811 = vmatpush2.msra.mxu0 0.0
    %812 = vmatprep.subr.mxu0 0.0
    %813 = vmatpush2.msra.mxu0 0.0
    %814 = vmatprep.subr.mxu0 0.0
    %815 = vmatpush2.msra.mxu0 0.0
    %816 = vmatprep.subr.mxu0 0.0
    %817 = vmatpush2.msra.mxu0 0.0
    %818 = vmatprep.subr.mxu0 0.0
    %819 = vmatpush2.msra.mxu0 0.0
    %820 = vmatprep.subr.mxu0 0.0
    %821 = vmatpush2.msra.mxu0 0.0
    %822 = vmatprep.mubr.f32.mxu0 0.0
    %823 = vmatmul.mubr.f32.gmra.mxu0 %v330
    %v824 = vpop.f32.mrf.mxu0
    %v825 = vadd.f32 0.0, %v824
    %v826 = vpop.f32.mrf.mxu0
    %827 = vdwg.mxu0
    %v828 = vadd.f32 %v484, %v825
    %s829 = scalar_lea.vmem %s6, 32
    %v830 = vld [vmem:[%s829] sm:$0xff]
    %v831 = vld [vmem:[%s829 + $0x8] sm:$0xff]
    %v832 = vld [vmem:[%s829 + $0x10] sm:$0xff]
    %v833 = vld [vmem:[%s829 + $0x18] sm:$0xff]
    %v834 = vlaneseq
    %v835 = vshrl.u32 %v834, 7
    %v836 = vsub.s32 4, %v835
    %v837 = vrot.slane %v486, %v836
    %v839 = vsel %vm142, %v828, 0
    %841 = vmatprep.subr.mxu0 0.0
    %842 = vmatpush1.msra.mxu0 0.0
    %843 = vmatprep.subr.mxu0 0.0
    %844 = vmatpush1.msra.mxu0 0.0
    %845 = vmatprep.subr.mxu0 0.0
    %846 = vmatpush1.msra.mxu0 0.0
    %847 = vmatprep.subr.mxu0 0.0
    %848 = vmatpush1.msra.mxu0 0.0
    %849 = vmatprep.subr.mxu0 0.0
    %850 = vmatpush1.msra.mxu0 0.0
    %851 = vmatprep.subr.mxu0 0.0
    %852 = vmatpush1.msra.mxu0 0.0
    %853 = vmatprep.subr.mxu0 0.0
    %854 = vmatpush1.msra.mxu0 0.0
    %855 = vmatprep.subr.mxu0 0.0
    %856 = vmatpush1.msra.mxu0 0.0
    %857 = vmatprep.subr.mxu0 0.0
    %858 = vmatpush1.msra.mxu0 0.0
    %859 = vmatprep.subr.mxu0 0.0
    %860 = vmatpush1.msra.mxu0 0.0
    %861 = vmatprep.subr.mxu0 0.0
    %862 = vmatpush1.msra.mxu0 0.0
    %863 = vmatprep.subr.mxu0 0.0
    %864 = vmatpush1.msra.mxu0 0.0
    %865 = vmatprep.subr.mxu0 0.0
    %866 = vmatpush1.msra.mxu0 %v833
    %867 = vmatprep.subr.mxu0 0.0
    %868 = vmatpush1.msra.mxu0 %v832
    %869 = vmatprep.subr.mxu0 0.0
    %870 = vmatpush1.msra.mxu0 %v831
    %871 = vmatprep.subr.mxu0 0.0
    %872 = vmatpush1.msra.mxu0 %v830
    %873 = vmatprep.subr.mxu0 0.0
    %874 = vmatpush2.msra.mxu0 0.0
    %875 = vmatprep.subr.mxu0 0.0
    %876 = vmatpush2.msra.mxu0 0.0
    %877 = vmatprep.subr.mxu0 0.0
    %878 = vmatpush2.msra.mxu0 0.0
    %879 = vmatprep.subr.mxu0 0.0
    %880 = vmatpush2.msra.mxu0 0.0
    %881 = vmatprep.subr.mxu0 0.0
    %882 = vmatpush2.msra.mxu0 0.0
    %883 = vmatprep.subr.mxu0 0.0
    %884 = vmatpush2.msra.mxu0 0.0
    %885 = vmatprep.subr.mxu0 0.0
    %886 = vmatpush2.msra.mxu0 0.0
    %887 = vmatprep.subr.mxu0 0.0
    %888 = vmatpush2.msra.mxu0 0.0
    %889 = vmatprep.subr.mxu0 0.0
    %890 = vmatpush2.msra.mxu0 0.0
    %891 = vmatprep.subr.mxu0 0.0
    %892 = vmatpush2.msra.mxu0 0.0
    %893 = vmatprep.subr.mxu0 0.0
    %894 = vmatpush2.msra.mxu0 0.0
    %895 = vmatprep.subr.mxu0 0.0
    %896 = vmatpush2.msra.mxu0 0.0
    %897 = vmatprep.subr.mxu0 0.0
    %898 = vmatpush2.msra.mxu0 0.0
    %899 = vmatprep.subr.mxu0 0.0
    %900 = vmatpush2.msra.mxu0 0.0
    %901 = vmatprep.subr.mxu0 0.0
    %902 = vmatpush2.msra.mxu0 0.0
    %903 = vmatprep.subr.mxu0 0.0
    %904 = vmatpush2.msra.mxu0 0.0
    %905 = vmatprep.mubr.f32.mxu0 0.0
    %906 = vmatmul.mubr.f32.gmra.mxu0 %v839
    %v907 = vpop.f32.mrf.mxu0
    %v908 = vadd.f32 %v837, %v907
    %v909 = vpop.f32.mrf.mxu0
    %910 = vdwg.mxu0
    %v911 = vmax.f32 %v908, 0.0
    %v912 = vadd.f32 %v484, %v911
    %s913 = scalar_lea.vmem %s5, 16
    %v914 = vld [vmem:[%s913] sm:$0xff]
    %915 = vmatprep.subr.mxu0 0.0
    %916 = vmatpush1.msra.mxu0 0.0
    %917 = vmatprep.subr.mxu0 0.0
    %918 = vmatpush1.msra.mxu0 0.0
    %919 = vmatprep.subr.mxu0 0.0
    %920 = vmatpush1.msra.mxu0 0.0
    %921 = vmatprep.subr.mxu0 0.0
    %922 = vmatpush1.msra.mxu0 0.0
    %923 = vmatprep.subr.mxu0 0.0
    %924 = vmatpush1.msra.mxu0 0.0
    %925 = vmatprep.subr.mxu0 0.0
    %926 = vmatpush1.msra.mxu0 0.0
    %927 = vmatprep.subr.mxu0 0.0
    %928 = vmatpush1.msra.mxu0 0.0
    %929 = vmatprep.subr.mxu0 0.0
    %930 = vmatpush1.msra.mxu0 0.0
    %931 = vmatprep.subr.mxu0 0.0
    %932 = vmatpush1.msra.mxu0 0.0
    %933 = vmatprep.subr.mxu0 0.0
    %934 = vmatpush1.msra.mxu0 0.0
    %935 = vmatprep.subr.mxu0 0.0
    %936 = vmatpush1.msra.mxu0 0.0
    %937 = vmatprep.subr.mxu0 0.0
    %938 = vmatpush1.msra.mxu0 0.0
    %939 = vmatprep.subr.mxu0 0.0
    %940 = vmatpush1.msra.mxu0 0.0
    %941 = vmatprep.subr.mxu0 0.0
    %942 = vmatpush1.msra.mxu0 0.0
    %943 = vmatprep.subr.mxu0 0.0
    %944 = vmatpush1.msra.mxu0 %v757
    %945 = vmatprep.subr.mxu0 0.0
    %946 = vmatpush1.msra.mxu0 %v756
    %947 = vmatprep.subr.mxu0 0.0
    %948 = vmatpush2.msra.mxu0 0.0
    %949 = vmatprep.subr.mxu0 0.0
    %950 = vmatpush2.msra.mxu0 0.0
    %951 = vmatprep.subr.mxu0 0.0
    %952 = vmatpush2.msra.mxu0 0.0
    %953 = vmatprep.subr.mxu0 0.0
    %954 = vmatpush2.msra.mxu0 0.0
    %955 = vmatprep.subr.mxu0 0.0
    %956 = vmatpush2.msra.mxu0 0.0
    %957 = vmatprep.subr.mxu0 0.0
    %958 = vmatpush2.msra.mxu0 0.0
    %959 = vmatprep.subr.mxu0 0.0
    %960 = vmatpush2.msra.mxu0 0.0
    %961 = vmatprep.subr.mxu0 0.0
    %962 = vmatpush2.msra.mxu0 0.0
    %963 = vmatprep.subr.mxu0 0.0
    %964 = vmatpush2.msra.mxu0 0.0
    %965 = vmatprep.subr.mxu0 0.0
    %966 = vmatpush2.msra.mxu0 0.0
    %967 = vmatprep.subr.mxu0 0.0
    %968 = vmatpush2.msra.mxu0 0.0
    %969 = vmatprep.subr.mxu0 0.0
    %970 = vmatpush2.msra.mxu0 0.0
    %971 = vmatprep.subr.mxu0 0.0
    %972 = vmatpush2.msra.mxu0 0.0
    %973 = vmatprep.subr.mxu0 0.0
    %974 = vmatpush2.msra.mxu0 0.0
    %975 = vmatprep.subr.mxu0 0.0
    %976 = vmatpush2.msra.mxu0 0.0
    %977 = vmatprep.subr.mxu0 0.0
    %978 = vmatpush2.msra.mxu0 0.0
    %979 = vmatprep.mubr.f32.mxu0 0.0
    %980 = vmatmul.mubr.f32.gmra.mxu0 %v54
    %v981 = vpop.f32.mrf.mxu0
    %v982 = vadd.f32 0.0, %v981
    %v983 = vpop.f32.mrf.mxu0
    %984 = vmatprep.mubr.f32.mxu0 0.0
    %985 = vmatmul.mubr.f32.gmra.mxu0 %v57
    %v986 = vpop.f32.mrf.mxu0
    %v987 = vadd.f32 0.0, %v986
    %v988 = vpop.f32.mrf.mxu0
    %989 = vdwg.mxu0
    %s990 = scalar_lea.vmem %s3, 64
    %v991 = vld [vmem:[%s990] sm:$0xff]
    %v992 = vld [vmem:[%s990 + $0x8] sm:$0xff]
    %v993 = vld [vmem:[%s990 + $0x10] sm:$0xff]
    %v994 = vld [vmem:[%s990 + $0x18] sm:$0xff]
    %v995 = vlaneseq
    %v996 = vshrl.u32 %v995, 7
    %v997 = vsub.s32 0, %v996
    %v998 = vrot.slane %v914, %v997
    %v1000 = vsel %vm142, %v982, 0
    %v1003 = vsel %vm142, %v987, 0
    %1005 = vmatprep.subr.mxu0 0.0
    %1006 = vmatpush1.msra.mxu0 0.0
    %1007 = vmatprep.subr.mxu0 0.0
    %1008 = vmatpush1.msra.mxu0 0.0
    %1009 = vmatprep.subr.mxu0 0.0
    %1010 = vmatpush1.msra.mxu0 0.0
    %1011 = vmatprep.subr.mxu0 0.0
    %1012 = vmatpush1.msra.mxu0 0.0
    %1013 = vmatprep.subr.mxu0 0.0
    %1014 = vmatpush1.msra.mxu0 0.0
    %1015 = vmatprep.subr.mxu0 0.0
    %1016 = vmatpush1.msra.mxu0 0.0
    %1017 = vmatprep.subr.mxu0 0.0
    %1018 = vmatpush1.msra.mxu0 0.0
    %1019 = vmatprep.subr.mxu0 0.0
    %1020 = vmatpush1.msra.mxu0 0.0
    %1021 = vmatprep.subr.mxu0 0.0
    %1022 = vmatpush1.msra.mxu0 0.0
    %1023 = vmatprep.subr.mxu0 0.0
    %1024 = vmatpush1.msra.mxu0 0.0
    %1025 = vmatprep.subr.mxu0 0.0
    %1026 = vmatpush1.msra.mxu0 0.0
    %1027 = vmatprep.subr.mxu0 0.0
    %1028 = vmatpush1.msra.mxu0 0.0
    %1029 = vmatprep.subr.mxu0 0.0
    %1030 = vmatpush1.msra.mxu0 %v994
    %1031 = vmatprep.subr.mxu0 0.0
    %1032 = vmatpush1.msra.mxu0 %v993
    %1033 = vmatprep.subr.mxu0 0.0
    %1034 = vmatpush1.msra.mxu0 %v992
    %1035 = vmatprep.subr.mxu0 0.0
    %1036 = vmatpush1.msra.mxu0 %v991
    %1037 = vmatprep.subr.mxu0 0.0
    %1038 = vmatpush2.msra.mxu0 0.0
    %1039 = vmatprep.subr.mxu0 0.0
    %1040 = vmatpush2.msra.mxu0 0.0
    %1041 = vmatprep.subr.mxu0 0.0
    %1042 = vmatpush2.msra.mxu0 0.0
    %1043 = vmatprep.subr.mxu0 0.0
    %1044 = vmatpush2.msra.mxu0 0.0
    %1045 = vmatprep.subr.mxu0 0.0
    %1046 = vmatpush2.msra.mxu0 0.0
    %1047 = vmatprep.subr.mxu0 0.0
    %1048 = vmatpush2.msra.mxu0 0.0
    %1049 = vmatprep.subr.mxu0 0.0
    %1050 = vmatpush2.msra.mxu0 0.0
    %1051 = vmatprep.subr.mxu0 0.0
    %1052 = vmatpush2.msra.mxu0 0.0
    %1053 = vmatprep.subr.mxu0 0.0
    %1054 = vmatpush2.msra.mxu0 0.0
    %1055 = vmatprep.subr.mxu0 0.0
    %1056 = vmatpush2.msra.mxu0 0.0
    %1057 = vmatprep.subr.mxu0 0.0
    %1058 = vmatpush2.msra.mxu0 0.0
    %1059 = vmatprep.subr.mxu0 0.0
    %1060 = vmatpush2.msra.mxu0 0.0
    %1061 = vmatprep.subr.mxu0 0.0
    %1062 = vmatpush2.msra.mxu0 0.0
    %1063 = vmatprep.subr.mxu0 0.0
    %1064 = vmatpush2.msra.mxu0 0.0
    %1065 = vmatprep.subr.mxu0 0.0
    %1066 = vmatpush2.msra.mxu0 0.0
    %1067 = vmatprep.subr.mxu0 0.0
    %1068 = vmatpush2.msra.mxu0 0.0
    %1069 = vmatprep.mubr.f32.mxu0 0.0
    %1070 = vmatmul.mubr.f32.gmra.mxu0 %v1000
    %v1071 = vpop.f32.mrf.mxu0
    %v1072 = vadd.f32 %v998, %v1071
    %v1073 = vpop.f32.mrf.mxu0
    %1074 = vmatprep.mubr.f32.mxu0 0.0
    %1075 = vmatmul.mubr.f32.gmra.mxu0 %v1003
    %v1076 = vpop.f32.mrf.mxu0
    %v1077 = vadd.f32 %v998, %v1076
    %v1078 = vpop.f32.mrf.mxu0
    %1079 = vdwg.mxu0
    %v1080 = vmax.f32 %v1072, 0.0
    %v1081 = vmax.f32 %v1077, 0.0
    %s1082 = scalar_lea.vmem %s4, 64
    %v1083 = vld [vmem:[%s1082] sm:$0xff]
    %v1084 = vld [vmem:[%s1082 + $0x8] sm:$0xff]
    %v1085 = vld [vmem:[%s1082 + $0x10] sm:$0xff]
    %v1086 = vld [vmem:[%s1082 + $0x18] sm:$0xff]
    %v1087 = vlaneseq
    %v1088 = vshrl.u32 %v1087, 7
    %v1089 = vsub.s32 1, %v1088
    %v1090 = vrot.slane %v914, %v1089
    %v1092 = vsel %vm142, %v1080, 0
    %v1095 = vsel %vm142, %v1081, 0
    %1097 = vmatprep.subr.mxu0 0.0
    %1098 = vmatpush1.msra.mxu0 0.0
    %1099 = vmatprep.subr.mxu0 0.0
    %1100 = vmatpush1.msra.mxu0 0.0
    %1101 = vmatprep.subr.mxu0 0.0
    %1102 = vmatpush1.msra.mxu0 0.0
    %1103 = vmatprep.subr.mxu0 0.0
    %1104 = vmatpush1.msra.mxu0 0.0
    %1105 = vmatprep.subr.mxu0 0.0
    %1106 = vmatpush1.msra.mxu0 0.0
    %1107 = vmatprep.subr.mxu0 0.0
    %1108 = vmatpush1.msra.mxu0 0.0
    %1109 = vmatprep.subr.mxu0 0.0
    %1110 = vmatpush1.msra.mxu0 0.0
    %1111 = vmatprep.subr.mxu0 0.0
    %1112 = vmatpush1.msra.mxu0 0.0
    %1113 = vmatprep.subr.mxu0 0.0
    %1114 = vmatpush1.msra.mxu0 0.0
    %1115 = vmatprep.subr.mxu0 0.0
    %1116 = vmatpush1.msra.mxu0 0.0
    %1117 = vmatprep.subr.mxu0 0.0
    %1118 = vmatpush1.msra.mxu0 0.0
    %1119 = vmatprep.subr.mxu0 0.0
    %1120 = vmatpush1.msra.mxu0 0.0
    %1121 = vmatprep.subr.mxu0 0.0
    %1122 = vmatpush1.msra.mxu0 %v1086
    %1123 = vmatprep.subr.mxu0 0.0
    %1124 = vmatpush1.msra.mxu0 %v1085
    %1125 = vmatprep.subr.mxu0 0.0
    %1126 = vmatpush1.msra.mxu0 %v1084
    %1127 = vmatprep.subr.mxu0 0.0
    %1128 = vmatpush1.msra.mxu0 %v1083
    %1129 = vmatprep.subr.mxu0 0.0
    %1130 = vmatpush2.msra.mxu0 0.0
    %1131 = vmatprep.subr.mxu0 0.0
    %1132 = vmatpush2.msra.mxu0 0.0
    %1133 = vmatprep.subr.mxu0 0.0
    %1134 = vmatpush2.msra.mxu0 0.0
    %1135 = vmatprep.subr.mxu0 0.0
    %1136 = vmatpush2.msra.mxu0 0.0
    %1137 = vmatprep.subr.mxu0 0.0
    %1138 = vmatpush2.msra.mxu0 0.0
    %1139 = vmatprep.subr.mxu0 0.0
    %1140 = vmatpush2.msra.mxu0 0.0
    %1141 = vmatprep.subr.mxu0 0.0
    %1142 = vmatpush2.msra.mxu0 0.0
    %1143 = vmatprep.subr.mxu0 0.0
    %1144 = vmatpush2.msra.mxu0 0.0
    %1145 = vmatprep.subr.mxu0 0.0
    %1146 = vmatpush2.msra.mxu0 0.0
    %1147 = vmatprep.subr.mxu0 0.0
    %1148 = vmatpush2.msra.mxu0 0.0
    %1149 = vmatprep.subr.mxu0 0.0
    %1150 = vmatpush2.msra.mxu0 0.0
    %1151 = vmatprep.subr.mxu0 0.0
    %1152 = vmatpush2.msra.mxu0 0.0
    %1153 = vmatprep.subr.mxu0 0.0
    %1154 = vmatpush2.msra.mxu0 0.0
    %1155 = vmatprep.subr.mxu0 0.0
    %1156 = vmatpush2.msra.mxu0 0.0
    %1157 = vmatprep.subr.mxu0 0.0
    %1158 = vmatpush2.msra.mxu0 0.0
    %1159 = vmatprep.subr.mxu0 0.0
    %1160 = vmatpush2.msra.mxu0 0.0
    %1161 = vmatprep.mubr.f32.mxu0 0.0
    %1162 = vmatmul.mubr.f32.gmra.mxu0 %v1092
    %v1163 = vpop.f32.mrf.mxu0
    %v1164 = vadd.f32 %v1090, %v1163
    %v1165 = vpop.f32.mrf.mxu0
    %1166 = vmatprep.mubr.f32.mxu0 0.0
    %1167 = vmatmul.mubr.f32.gmra.mxu0 %v1095
    %v1168 = vpop.f32.mrf.mxu0
    %v1169 = vadd.f32 %v1090, %v1168
    %v1170 = vpop.f32.mrf.mxu0
    %1171 = vdwg.mxu0
    %v1172 = vmax.f32 %v1164, 0.0
    %v1173 = vmax.f32 %v1169, 0.0
    %v1174 = vlaneseq
    %v1175 = vshrl.u32 %v1174, 7
    %v1176 = vsub.s32 2, %v1175
    %v1177 = vrot.slane %v914, %v1176
    %v1178 = vmul.f32 %v1172, %v1177
    %v1179 = vmul.f32 %v1173, %v1177
    %v1180 = vlaneseq
    %v1181 = vshrl.u32 %v1180, 7
    %v1182 = vsub.s32 3, %v1181
    %v1183 = vrot.slane %v914, %v1182
    %v1184 = vadd.f32 %v1178, %v1183
    %v1185 = vadd.f32 %v1179, %v1183
    %1186 = vmatprep.subr.mxu0 0.0
    %1187 = vmatpush1.msra.mxu0 0.0
    %1188 = vmatprep.subr.mxu0 0.0
    %1189 = vmatpush1.msra.mxu0 0.0
    %1190 = vmatprep.subr.mxu0 0.0
    %1191 = vmatpush1.msra.mxu0 0.0
    %1192 = vmatprep.subr.mxu0 0.0
    %1193 = vmatpush1.msra.mxu0 0.0
    %1194 = vmatprep.subr.mxu0 0.0
    %1195 = vmatpush1.msra.mxu0 0.0
    %1196 = vmatprep.subr.mxu0 0.0
    %1197 = vmatpush1.msra.mxu0 0.0
    %1198 = vmatprep.subr.mxu0 0.0
    %1199 = vmatpush1.msra.mxu0 0.0
    %1200 = vmatprep.subr.mxu0 0.0
    %1201 = vmatpush1.msra.mxu0 0.0
    %1202 = vmatprep.subr.mxu0 0.0
    %1203 = vmatpush1.msra.mxu0 0.0
    %1204 = vmatprep.subr.mxu0 0.0
    %1205 = vmatpush1.msra.mxu0 0.0
    %1206 = vmatprep.subr.mxu0 0.0
    %1207 = vmatpush1.msra.mxu0 0.0
    %1208 = vmatprep.subr.mxu0 0.0
    %1209 = vmatpush1.msra.mxu0 0.0
    %1210 = vmatprep.subr.mxu0 0.0
    %1211 = vmatpush1.msra.mxu0 0.0
    %1212 = vmatprep.subr.mxu0 0.0
    %1213 = vmatpush1.msra.mxu0 0.0
    %1214 = vmatprep.subr.mxu0 0.0
    %1215 = vmatpush1.msra.mxu0 %v1185
    %1216 = vmatprep.subr.mxu0 0.0
    %1217 = vmatpush1.msra.mxu0 %v1184
    %1218 = vmatprep.subr.mxu0 0.0
    %1219 = vmatpush2.msra.mxu0 0.0
    %1220 = vmatprep.subr.mxu0 0.0
    %1221 = vmatpush2.msra.mxu0 0.0
    %1222 = vmatprep.subr.mxu0 0.0
    %1223 = vmatpush2.msra.mxu0 0.0
    %1224 = vmatprep.subr.mxu0 0.0
    %1225 = vmatpush2.msra.mxu0 0.0
    %1226 = vmatprep.subr.mxu0 0.0
    %1227 = vmatpush2.msra.mxu0 0.0
    %1228 = vmatprep.subr.mxu0 0.0
    %1229 = vmatpush2.msra.mxu0 0.0
    %1230 = vmatprep.subr.mxu0 0.0
    %1231 = vmatpush2.msra.mxu0 0.0
    %1232 = vmatprep.subr.mxu0 0.0
    %1233 = vmatpush2.msra.mxu0 0.0
    %1234 = vmatprep.subr.mxu0 0.0
    %1235 = vmatpush2.msra.mxu0 0.0
    %1236 = vmatprep.subr.mxu0 0.0
    %1237 = vmatpush2.msra.mxu0 0.0
    %1238 = vmatprep.subr.mxu0 0.0
    %1239 = vmatpush2.msra.mxu0 0.0
    %1240 = vmatprep.subr.mxu0 0.0
    %1241 = vmatpush2.msra.mxu0 0.0
    %1242 = vmatprep.subr.mxu0 0.0
    %1243 = vmatpush2.msra.mxu0 0.0
    %1244 = vmatprep.subr.mxu0 0.0
    %1245 = vmatpush2.msra.mxu0 0.0
    %1246 = vmatprep.subr.mxu0 0.0
    %1247 = vmatpush2.msra.mxu0 0.0
    %1248 = vmatprep.subr.mxu0 0.0
    %1249 = vmatpush2.msra.mxu0 0.0
    %1250 = vmatprep.mubr.f32.mxu0 0.0
    %1251 = vmatmul.mubr.f32.gmra.mxu0 %v330
    %v1252 = vpop.f32.mrf.mxu0
    %v1253 = vadd.f32 0.0, %v1252
    %v1254 = vpop.f32.mrf.mxu0
    %1255 = vdwg.mxu0
    %v1256 = vadd.f32 %v912, %v1253
    %s1257 = scalar_lea.vmem %s6, 64
    %v1258 = vld [vmem:[%s1257] sm:$0xff]
    %v1259 = vld [vmem:[%s1257 + $0x8] sm:$0xff]
    %v1260 = vld [vmem:[%s1257 + $0x10] sm:$0xff]
    %v1261 = vld [vmem:[%s1257 + $0x18] sm:$0xff]
    %v1262 = vlaneseq
    %v1263 = vshrl.u32 %v1262, 7
    %v1264 = vsub.s32 4, %v1263
    %v1265 = vrot.slane %v914, %v1264
    %v1267 = vsel %vm142, %v1256, 0
    %1269 = vmatprep.subr.mxu0 0.0
    %1270 = vmatpush1.msra.mxu0 0.0
    %1271 = vmatprep.subr.mxu0 0.0
    %1272 = vmatpush1.msra.mxu0 0.0
    %1273 = vmatprep.subr.mxu0 0.0
    %1274 = vmatpush1.msra.mxu0 0.0
    %1275 = vmatprep.subr.mxu0 0.0
    %1276 = vmatpush1.msra.mxu0 0.0
    %1277 = vmatprep.subr.mxu0 0.0
    %1278 = vmatpush1.msra.mxu0 0.0
    %1279 = vmatprep.subr.mxu0 0.0
    %1280 = vmatpush1.msra.mxu0 0.0
    %1281 = vmatprep.subr.mxu0 0.0
    %1282 = vmatpush1.msra.mxu0 0.0
    %1283 = vmatprep.subr.mxu0 0.0
    %1284 = vmatpush1.msra.mxu0 0.0
    %1285 = vmatprep.subr.mxu0 0.0
    %1286 = vmatpush1.msra.mxu0 0.0
    %1287 = vmatprep.subr.mxu0 0.0
    %1288 = vmatpush1.msra.mxu0 0.0
    %1289 = vmatprep.subr.mxu0 0.0
    %1290 = vmatpush1.msra.mxu0 0.0
    %1291 = vmatprep.subr.mxu0 0.0
    %1292 = vmatpush1.msra.mxu0 0.0
    %1293 = vmatprep.subr.mxu0 0.0
    %1294 = vmatpush1.msra.mxu0 %v1261
    %1295 = vmatprep.subr.mxu0 0.0
    %1296 = vmatpush1.msra.mxu0 %v1260
    %1297 = vmatprep.subr.mxu0 0.0
    %1298 = vmatpush1.msra.mxu0 %v1259
    %1299 = vmatprep.subr.mxu0 0.0
    %1300 = vmatpush1.msra.mxu0 %v1258
    %1301 = vmatprep.subr.mxu0 0.0
    %1302 = vmatpush2.msra.mxu0 0.0
    %1303 = vmatprep.subr.mxu0 0.0
    %1304 = vmatpush2.msra.mxu0 0.0
    %1305 = vmatprep.subr.mxu0 0.0
    %1306 = vmatpush2.msra.mxu0 0.0
    %1307 = vmatprep.subr.mxu0 0.0
    %1308 = vmatpush2.msra.mxu0 0.0
    %1309 = vmatprep.subr.mxu0 0.0
    %1310 = vmatpush2.msra.mxu0 0.0
    %1311 = vmatprep.subr.mxu0 0.0
    %1312 = vmatpush2.msra.mxu0 0.0
    %1313 = vmatprep.subr.mxu0 0.0
    %1314 = vmatpush2.msra.mxu0 0.0
    %1315 = vmatprep.subr.mxu0 0.0
    %1316 = vmatpush2.msra.mxu0 0.0
    %1317 = vmatprep.subr.mxu0 0.0
    %1318 = vmatpush2.msra.mxu0 0.0
    %1319 = vmatprep.subr.mxu0 0.0
    %1320 = vmatpush2.msra.mxu0 0.0
    %1321 = vmatprep.subr.mxu0 0.0
    %1322 = vmatpush2.msra.mxu0 0.0
    %1323 = vmatprep.subr.mxu0 0.0
    %1324 = vmatpush2.msra.mxu0 0.0
    %1325 = vmatprep.subr.mxu0 0.0
    %1326 = vmatpush2.msra.mxu0 0.0
    %1327 = vmatprep.subr.mxu0 0.0
    %1328 = vmatpush2.msra.mxu0 0.0
    %1329 = vmatprep.subr.mxu0 0.0
    %1330 = vmatpush2.msra.mxu0 0.0
    %1331 = vmatprep.subr.mxu0 0.0
    %1332 = vmatpush2.msra.mxu0 0.0
    %1333 = vmatprep.mubr.f32.mxu0 0.0
    %1334 = vmatmul.mubr.f32.gmra.mxu0 %v1267
    %v1335 = vpop.f32.mrf.mxu0
    %v1336 = vadd.f32 %v1265, %v1335
    %v1337 = vpop.f32.mrf.mxu0
    %1338 = vdwg.mxu0
    %v1339 = vmax.f32 %v1336, 0.0
    %v1340 = vadd.f32 %v912, %v1339
    %s1341 = scalar_lea.vmem %s5, 24
    %v1342 = vld [vmem:[%s1341] sm:$0xff]
    %1343 = vmatprep.subr.mxu0 0.0
    %1344 = vmatpush1.msra.mxu0 0.0
    %1345 = vmatprep.subr.mxu0 0.0
    %1346 = vmatpush1.msra.mxu0 0.0
    %1347 = vmatprep.subr.mxu0 0.0
    %1348 = vmatpush1.msra.mxu0 0.0
    %1349 = vmatprep.subr.mxu0 0.0
    %1350 = vmatpush1.msra.mxu0 0.0
    %1351 = vmatprep.subr.mxu0 0.0
    %1352 = vmatpush1.msra.mxu0 0.0
    %1353 = vmatprep.subr.mxu0 0.0
    %1354 = vmatpush1.msra.mxu0 0.0
    %1355 = vmatprep.subr.mxu0 0.0
    %1356 = vmatpush1.msra.mxu0 0.0
    %1357 = vmatprep.subr.mxu0 0.0
    %1358 = vmatpush1.msra.mxu0 0.0
    %1359 = vmatprep.subr.mxu0 0.0
    %1360 = vmatpush1.msra.mxu0 0.0
    %1361 = vmatprep.subr.mxu0 0.0
    %1362 = vmatpush1.msra.mxu0 0.0
    %1363 = vmatprep.subr.mxu0 0.0
    %1364 = vmatpush1.msra.mxu0 0.0
    %1365 = vmatprep.subr.mxu0 0.0
    %1366 = vmatpush1.msra.mxu0 0.0
    %1367 = vmatprep.subr.mxu0 0.0
    %1368 = vmatpush1.msra.mxu0 0.0
    %1369 = vmatprep.subr.mxu0 0.0
    %1370 = vmatpush1.msra.mxu0 0.0
    %1371 = vmatprep.subr.mxu0 0.0
    %1372 = vmatpush1.msra.mxu0 %v1185
    %1373 = vmatprep.subr.mxu0 0.0
    %1374 = vmatpush1.msra.mxu0 %v1184
    %1375 = vmatprep.subr.mxu0 0.0
    %1376 = vmatpush2.msra.mxu0 0.0
    %1377 = vmatprep.subr.mxu0 0.0
    %1378 = vmatpush2.msra.mxu0 0.0
    %1379 = vmatprep.subr.mxu0 0.0
    %1380 = vmatpush2.msra.mxu0 0.0
    %1381 = vmatprep.subr.mxu0 0.0
    %1382 = vmatpush2.msra.mxu0 0.0
    %1383 = vmatprep.subr.mxu0 0.0
    %1384 = vmatpush2.msra.mxu0 0.0
    %1385 = vmatprep.subr.mxu0 0.0
    %1386 = vmatpush2.msra.mxu0 0.0
    %1387 = vmatprep.subr.mxu0 0.0
    %1388 = vmatpush2.msra.mxu0 0.0
    %1389 = vmatprep.subr.mxu0 0.0
    %1390 = vmatpush2.msra.mxu0 0.0
    %1391 = vmatprep.subr.mxu0 0.0
    %1392 = vmatpush2.msra.mxu0 0.0
    %1393 = vmatprep.subr.mxu0 0.0
    %1394 = vmatpush2.msra.mxu0 0.0
    %1395 = vmatprep.subr.mxu0 0.0
    %1396 = vmatpush2.msra.mxu0 0.0
    %1397 = vmatprep.subr.mxu0 0.0
    %1398 = vmatpush2.msra.mxu0 0.0
    %1399 = vmatprep.subr.mxu0 0.0
    %1400 = vmatpush2.msra.mxu0 0.0
    %1401 = vmatprep.subr.mxu0 0.0
    %1402 = vmatpush2.msra.mxu0 0.0
    %1403 = vmatprep.subr.mxu0 0.0
    %1404 = vmatpush2.msra.mxu0 0.0
    %1405 = vmatprep.subr.mxu0 0.0
    %1406 = vmatpush2.msra.mxu0 0.0
    %1407 = vmatprep.mubr.f32.mxu0 0.0
    %1408 = vmatmul.mubr.f32.gmra.mxu0 %v54
    %v1409 = vpop.f32.mrf.mxu0
    %v1410 = vadd.f32 0.0, %v1409
    %v1411 = vpop.f32.mrf.mxu0
    %1412 = vmatprep.mubr.f32.mxu0 0.0
    %1413 = vmatmul.mubr.f32.gmra.mxu0 %v57
    %v1414 = vpop.f32.mrf.mxu0
    %v1415 = vadd.f32 0.0, %v1414
    %v1416 = vpop.f32.mrf.mxu0
    %1417 = vdwg.mxu0
    %s1418 = scalar_lea.vmem %s3, 96
    %v1419 = vld [vmem:[%s1418] sm:$0xff]
    %v1420 = vld [vmem:[%s1418 + $0x8] sm:$0xff]
    %v1421 = vld [vmem:[%s1418 + $0x10] sm:$0xff]
    %v1422 = vld [vmem:[%s1418 + $0x18] sm:$0xff]
    %v1423 = vlaneseq
    %v1424 = vshrl.u32 %v1423, 7
    %v1425 = vsub.s32 0, %v1424
    %v1426 = vrot.slane %v1342, %v1425
    %v1428 = vsel %vm142, %v1410, 0
    %v1431 = vsel %vm142, %v1415, 0
    %1433 = vmatprep.subr.mxu0 0.0
    %1434 = vmatpush1.msra.mxu0 0.0
    %1435 = vmatprep.subr.mxu0 0.0
    %1436 = vmatpush1.msra.mxu0 0.0
    %1437 = vmatprep.subr.mxu0 0.0
    %1438 = vmatpush1.msra.mxu0 0.0
    %1439 = vmatprep.subr.mxu0 0.0
    %1440 = vmatpush1.msra.mxu0 0.0
    %1441 = vmatprep.subr.mxu0 0.0
    %1442 = vmatpush1.msra.mxu0 0.0
    %1443 = vmatprep.subr.mxu0 0.0
    %1444 = vmatpush1.msra.mxu0 0.0
    %1445 = vmatprep.subr.mxu0 0.0
    %1446 = vmatpush1.msra.mxu0 0.0
    %1447 = vmatprep.subr.mxu0 0.0
    %1448 = vmatpush1.msra.mxu0 0.0
    %1449 = vmatprep.subr.mxu0 0.0
    %1450 = vmatpush1.msra.mxu0 0.0
    %1451 = vmatprep.subr.mxu0 0.0
    %1452 = vmatpush1.msra.mxu0 0.0
    %1453 = vmatprep.subr.mxu0 0.0
    %1454 = vmatpush1.msra.mxu0 0.0
    %1455 = vmatprep.subr.mxu0 0.0
    %1456 = vmatpush1.msra.mxu0 0.0
    %1457 = vmatprep.subr.mxu0 0.0
    %1458 = vmatpush1.msra.mxu0 %v1422
    %1459 = vmatprep.subr.mxu0 0.0
    %1460 = vmatpush1.msra.mxu0 %v1421
    %1461 = vmatprep.subr.mxu0 0.0
    %1462 = vmatpush1.msra.mxu0 %v1420
    %1463 = vmatprep.subr.mxu0 0.0
    %1464 = vmatpush1.msra.mxu0 %v1419
    %1465 = vmatprep.subr.mxu0 0.0
    %1466 = vmatpush2.msra.mxu0 0.0
    %1467 = vmatprep.subr.mxu0 0.0
    %1468 = vmatpush2.msra.mxu0 0.0
    %1469 = vmatprep.subr.mxu0 0.0
    %1470 = vmatpush2.msra.mxu0 0.0
    %1471 = vmatprep.subr.mxu0 0.0
    %1472 = vmatpush2.msra.mxu0 0.0
    %1473 = vmatprep.subr.mxu0 0.0
    %1474 = vmatpush2.msra.mxu0 0.0
    %1475 = vmatprep.subr.mxu0 0.0
    %1476 = vmatpush2.msra.mxu0 0.0
    %1477 = vmatprep.subr.mxu0 0.0
    %1478 = vmatpush2.msra.mxu0 0.0
    %1479 = vmatprep.subr.mxu0 0.0
    %1480 = vmatpush2.msra.mxu0 0.0
    %1481 = vmatprep.subr.mxu0 0.0
    %1482 = vmatpush2.msra.mxu0 0.0
    %1483 = vmatprep.subr.mxu0 0.0
    %1484 = vmatpush2.msra.mxu0 0.0
    %1485 = vmatprep.subr.mxu0 0.0
    %1486 = vmatpush2.msra.mxu0 0.0
    %1487 = vmatprep.subr.mxu0 0.0
    %1488 = vmatpush2.msra.mxu0 0.0
    %1489 = vmatprep.subr.mxu0 0.0
    %1490 = vmatpush2.msra.mxu0 0.0
    %1491 = vmatprep.subr.mxu0 0.0
    %1492 = vmatpush2.msra.mxu0 0.0
    %1493 = vmatprep.subr.mxu0 0.0
    %1494 = vmatpush2.msra.mxu0 0.0
    %1495 = vmatprep.subr.mxu0 0.0
    %1496 = vmatpush2.msra.mxu0 0.0
    %1497 = vmatprep.mubr.f32.mxu0 0.0
    %1498 = vmatmul.mubr.f32.gmra.mxu0 %v1428
    %v1499 = vpop.f32.mrf.mxu0
    %v1500 = vadd.f32 %v1426, %v1499
    %v1501 = vpop.f32.mrf.mxu0
    %1502 = vmatprep.mubr.f32.mxu0 0.0
    %1503 = vmatmul.mubr.f32.gmra.mxu0 %v1431
    %v1504 = vpop.f32.mrf.mxu0
    %v1505 = vadd.f32 %v1426, %v1504
    %v1506 = vpop.f32.mrf.mxu0
    %1507 = vdwg.mxu0
    %v1508 = vmax.f32 %v1500, 0.0
    %v1509 = vmax.f32 %v1505, 0.0
    %s1510 = scalar_lea.vmem %s4, 96
    %v1511 = vld [vmem:[%s1510] sm:$0xff]
    %v1512 = vld [vmem:[%s1510 + $0x8] sm:$0xff]
    %v1513 = vld [vmem:[%s1510 + $0x10] sm:$0xff]
    %v1514 = vld [vmem:[%s1510 + $0x18] sm:$0xff]
    %v1515 = vlaneseq
    %v1516 = vshrl.u32 %v1515, 7
    %v1517 = vsub.s32 1, %v1516
    %v1518 = vrot.slane %v1342, %v1517
    %v1520 = vsel %vm142, %v1508, 0
    %v1523 = vsel %vm142, %v1509, 0
    %1525 = vmatprep.subr.mxu0 0.0
    %1526 = vmatpush1.msra.mxu0 0.0
    %1527 = vmatprep.subr.mxu0 0.0
    %1528 = vmatpush1.msra.mxu0 0.0
    %1529 = vmatprep.subr.mxu0 0.0
    %1530 = vmatpush1.msra.mxu0 0.0
    %1531 = vmatprep.subr.mxu0 0.0
    %1532 = vmatpush1.msra.mxu0 0.0
    %1533 = vmatprep.subr.mxu0 0.0
    %1534 = vmatpush1.msra.mxu0 0.0
    %1535 = vmatprep.subr.mxu0 0.0
    %1536 = vmatpush1.msra.mxu0 0.0
    %1537 = vmatprep.subr.mxu0 0.0
    %1538 = vmatpush1.msra.mxu0 0.0
    %1539 = vmatprep.subr.mxu0 0.0
    %1540 = vmatpush1.msra.mxu0 0.0
    %1541 = vmatprep.subr.mxu0 0.0
    %1542 = vmatpush1.msra.mxu0 0.0
    %1543 = vmatprep.subr.mxu0 0.0
    %1544 = vmatpush1.msra.mxu0 0.0
    %1545 = vmatprep.subr.mxu0 0.0
    %1546 = vmatpush1.msra.mxu0 0.0
    %1547 = vmatprep.subr.mxu0 0.0
    %1548 = vmatpush1.msra.mxu0 0.0
    %1549 = vmatprep.subr.mxu0 0.0
    %1550 = vmatpush1.msra.mxu0 %v1514
    %1551 = vmatprep.subr.mxu0 0.0
    %1552 = vmatpush1.msra.mxu0 %v1513
    %1553 = vmatprep.subr.mxu0 0.0
    %1554 = vmatpush1.msra.mxu0 %v1512
    %1555 = vmatprep.subr.mxu0 0.0
    %1556 = vmatpush1.msra.mxu0 %v1511
    %1557 = vmatprep.subr.mxu0 0.0
    %1558 = vmatpush2.msra.mxu0 0.0
    %1559 = vmatprep.subr.mxu0 0.0
    %1560 = vmatpush2.msra.mxu0 0.0
    %1561 = vmatprep.subr.mxu0 0.0
    %1562 = vmatpush2.msra.mxu0 0.0
    %1563 = vmatprep.subr.mxu0 0.0
    %1564 = vmatpush2.msra.mxu0 0.0
    %1565 = vmatprep.subr.mxu0 0.0
    %1566 = vmatpush2.msra.mxu0 0.0
    %1567 = vmatprep.subr.mxu0 0.0
    %1568 = vmatpush2.msra.mxu0 0.0
    %1569 = vmatprep.subr.mxu0 0.0
    %1570 = vmatpush2.msra.mxu0 0.0
    %1571 = vmatprep.subr.mxu0 0.0
    %1572 = vmatpush2.msra.mxu0 0.0
    %1573 = vmatprep.subr.mxu0 0.0
    %1574 = vmatpush2.msra.mxu0 0.0
    %1575 = vmatprep.subr.mxu0 0.0
    %1576 = vmatpush2.msra.mxu0 0.0
    %1577 = vmatprep.subr.mxu0 0.0
    %1578 = vmatpush2.msra.mxu0 0.0
    %1579 = vmatprep.subr.mxu0 0.0
    %1580 = vmatpush2.msra.mxu0 0.0
    %1581 = vmatprep.subr.mxu0 0.0
    %1582 = vmatpush2.msra.mxu0 0.0
    %1583 = vmatprep.subr.mxu0 0.0
    %1584 = vmatpush2.msra.mxu0 0.0
    %1585 = vmatprep.subr.mxu0 0.0
    %1586 = vmatpush2.msra.mxu0 0.0
    %1587 = vmatprep.subr.mxu0 0.0
    %1588 = vmatpush2.msra.mxu0 0.0
    %1589 = vmatprep.mubr.f32.mxu0 0.0
    %1590 = vmatmul.mubr.f32.gmra.mxu0 %v1520
    %v1591 = vpop.f32.mrf.mxu0
    %v1592 = vadd.f32 %v1518, %v1591
    %v1593 = vpop.f32.mrf.mxu0
    %1594 = vmatprep.mubr.f32.mxu0 0.0
    %1595 = vmatmul.mubr.f32.gmra.mxu0 %v1523
    %v1596 = vpop.f32.mrf.mxu0
    %v1597 = vadd.f32 %v1518, %v1596
    %v1598 = vpop.f32.mrf.mxu0
    %1599 = vdwg.mxu0
    %v1600 = vmax.f32 %v1592, 0.0
    %v1601 = vmax.f32 %v1597, 0.0
    %v1602 = vlaneseq
    %v1603 = vshrl.u32 %v1602, 7
    %v1604 = vsub.s32 2, %v1603
    %v1605 = vrot.slane %v1342, %v1604
    %v1606 = vmul.f32 %v1600, %v1605
    %v1607 = vmul.f32 %v1601, %v1605
    %v1608 = vlaneseq
    %v1609 = vshrl.u32 %v1608, 7
    %v1610 = vsub.s32 3, %v1609
    %v1611 = vrot.slane %v1342, %v1610
    %v1612 = vadd.f32 %v1606, %v1611
    %v1613 = vadd.f32 %v1607, %v1611
    %1614 = vmatprep.subr.mxu0 0.0
    %1615 = vmatpush1.msra.mxu0 0.0
    %1616 = vmatprep.subr.mxu0 0.0
    %1617 = vmatpush1.msra.mxu0 0.0
    %1618 = vmatprep.subr.mxu0 0.0
    %1619 = vmatpush1.msra.mxu0 0.0
    %1620 = vmatprep.subr.mxu0 0.0
    %1621 = vmatpush1.msra.mxu0 0.0
    %1622 = vmatprep.subr.mxu0 0.0
    %1623 = vmatpush1.msra.mxu0 0.0
    %1624 = vmatprep.subr.mxu0 0.0
    %1625 = vmatpush1.msra.mxu0 0.0
    %1626 = vmatprep.subr.mxu0 0.0
    %1627 = vmatpush1.msra.mxu0 0.0
    %1628 = vmatprep.subr.mxu0 0.0
    %1629 = vmatpush1.msra.mxu0 0.0
    %1630 = vmatprep.subr.mxu0 0.0
    %1631 = vmatpush1.msra.mxu0 0.0
    %1632 = vmatprep.subr.mxu0 0.0
    %1633 = vmatpush1.msra.mxu0 0.0
    %1634 = vmatprep.subr.mxu0 0.0
    %1635 = vmatpush1.msra.mxu0 0.0
    %1636 = vmatprep.subr.mxu0 0.0
    %1637 = vmatpush1.msra.mxu0 0.0
    %1638 = vmatprep.subr.mxu0 0.0
    %1639 = vmatpush1.msra.mxu0 0.0
    %1640 = vmatprep.subr.mxu0 0.0
    %1641 = vmatpush1.msra.mxu0 0.0
    %1642 = vmatprep.subr.mxu0 0.0
    %1643 = vmatpush1.msra.mxu0 %v1613
    %1644 = vmatprep.subr.mxu0 0.0
    %1645 = vmatpush1.msra.mxu0 %v1612
    %1646 = vmatprep.subr.mxu0 0.0
    %1647 = vmatpush2.msra.mxu0 0.0
    %1648 = vmatprep.subr.mxu0 0.0
    %1649 = vmatpush2.msra.mxu0 0.0
    %1650 = vmatprep.subr.mxu0 0.0
    %1651 = vmatpush2.msra.mxu0 0.0
    %1652 = vmatprep.subr.mxu0 0.0
    %1653 = vmatpush2.msra.mxu0 0.0
    %1654 = vmatprep.subr.mxu0 0.0
    %1655 = vmatpush2.msra.mxu0 0.0
    %1656 = vmatprep.subr.mxu0 0.0
    %1657 = vmatpush2.msra.mxu0 0.0
    %1658 = vmatprep.subr.mxu0 0.0
    %1659 = vmatpush2.msra.mxu0 0.0
    %1660 = vmatprep.subr.mxu0 0.0
    %1661 = vmatpush2.msra.mxu0 0.0
    %1662 = vmatprep.subr.mxu0 0.0
    %1663 = vmatpush2.msra.mxu0 0.0
    %1664 = vmatprep.subr.mxu0 0.0
    %1665 = vmatpush2.msra.mxu0 0.0
    %1666 = vmatprep.subr.mxu0 0.0
    %1667 = vmatpush2.msra.mxu0 0.0
    %1668 = vmatprep.subr.mxu0 0.0
    %1669 = vmatpush2.msra.mxu0 0.0
    %1670 = vmatprep.subr.mxu0 0.0
    %1671 = vmatpush2.msra.mxu0 0.0
    %1672 = vmatprep.subr.mxu0 0.0
    %1673 = vmatpush2.msra.mxu0 0.0
    %1674 = vmatprep.subr.mxu0 0.0
    %1675 = vmatpush2.msra.mxu0 0.0
    %1676 = vmatprep.subr.mxu0 0.0
    %1677 = vmatpush2.msra.mxu0 0.0
    %1678 = vmatprep.mubr.f32.mxu0 0.0
    %1679 = vmatmul.mubr.f32.gmra.mxu0 %v330
    %v1680 = vpop.f32.mrf.mxu0
    %v1681 = vadd.f32 0.0, %v1680
    %v1682 = vpop.f32.mrf.mxu0
    %1683 = vdwg.mxu0
    %v1684 = vadd.f32 %v1340, %v1681
    %s1685 = scalar_lea.vmem %s6, 96
    %v1686 = vld [vmem:[%s1685] sm:$0xff]
    %v1687 = vld [vmem:[%s1685 + $0x8] sm:$0xff]
    %v1688 = vld [vmem:[%s1685 + $0x10] sm:$0xff]
    %v1689 = vld [vmem:[%s1685 + $0x18] sm:$0xff]
    %v1690 = vlaneseq
    %v1691 = vshrl.u32 %v1690, 7
    %v1692 = vsub.s32 4, %v1691
    %v1693 = vrot.slane %v1342, %v1692
    %v1695 = vsel %vm142, %v1684, 0
    %1697 = vmatprep.subr.mxu0 0.0
    %1698 = vmatpush1.msra.mxu0 0.0
    %1699 = vmatprep.subr.mxu0 0.0
    %1700 = vmatpush1.msra.mxu0 0.0
    %1701 = vmatprep.subr.mxu0 0.0
    %1702 = vmatpush1.msra.mxu0 0.0
    %1703 = vmatprep.subr.mxu0 0.0
    %1704 = vmatpush1.msra.mxu0 0.0
    %1705 = vmatprep.subr.mxu0 0.0
    %1706 = vmatpush1.msra.mxu0 0.0
    %1707 = vmatprep.subr.mxu0 0.0
    %1708 = vmatpush1.msra.mxu0 0.0
    %1709 = vmatprep.subr.mxu0 0.0
    %1710 = vmatpush1.msra.mxu0 0.0
    %1711 = vmatprep.subr.mxu0 0.0
    %1712 = vmatpush1.msra.mxu0 0.0
    %1713 = vmatprep.subr.mxu0 0.0
    %1714 = vmatpush1.msra.mxu0 0.0
    %1715 = vmatprep.subr.mxu0 0.0
    %1716 = vmatpush1.msra.mxu0 0.0
    %1717 = vmatprep.subr.mxu0 0.0
    %1718 = vmatpush1.msra.mxu0 0.0
    %1719 = vmatprep.subr.mxu0 0.0
    %1720 = vmatpush1.msra.mxu0 0.0
    %1721 = vmatprep.subr.mxu0 0.0
    %1722 = vmatpush1.msra.mxu0 %v1689
    %1723 = vmatprep.subr.mxu0 0.0
    %1724 = vmatpush1.msra.mxu0 %v1688
    %1725 = vmatprep.subr.mxu0 0.0
    %1726 = vmatpush1.msra.mxu0 %v1687
    %1727 = vmatprep.subr.mxu0 0.0
    %1728 = vmatpush1.msra.mxu0 %v1686
    %1729 = vmatprep.subr.mxu0 0.0
    %1730 = vmatpush2.msra.mxu0 0.0
    %1731 = vmatprep.subr.mxu0 0.0
    %1732 = vmatpush2.msra.mxu0 0.0
    %1733 = vmatprep.subr.mxu0 0.0
    %1734 = vmatpush2.msra.mxu0 0.0
    %1735 = vmatprep.subr.mxu0 0.0
    %1736 = vmatpush2.msra.mxu0 0.0
    %1737 = vmatprep.subr.mxu0 0.0
    %1738 = vmatpush2.msra.mxu0 0.0
    %1739 = vmatprep.subr.mxu0 0.0
    %1740 = vmatpush2.msra.mxu0 0.0
    %1741 = vmatprep.subr.mxu0 0.0
    %1742 = vmatpush2.msra.mxu0 0.0
    %1743 = vmatprep.subr.mxu0 0.0
    %1744 = vmatpush2.msra.mxu0 0.0
    %1745 = vmatprep.subr.mxu0 0.0
    %1746 = vmatpush2.msra.mxu0 0.0
    %1747 = vmatprep.subr.mxu0 0.0
    %1748 = vmatpush2.msra.mxu0 0.0
    %1749 = vmatprep.subr.mxu0 0.0
    %1750 = vmatpush2.msra.mxu0 0.0
    %1751 = vmatprep.subr.mxu0 0.0
    %1752 = vmatpush2.msra.mxu0 0.0
    %1753 = vmatprep.subr.mxu0 0.0
    %1754 = vmatpush2.msra.mxu0 0.0
    %1755 = vmatprep.subr.mxu0 0.0
    %1756 = vmatpush2.msra.mxu0 0.0
    %1757 = vmatprep.subr.mxu0 0.0
    %1758 = vmatpush2.msra.mxu0 0.0
    %1759 = vmatprep.subr.mxu0 0.0
    %1760 = vmatpush2.msra.mxu0 0.0
    %1761 = vmatprep.mubr.f32.mxu0 0.0
    %1762 = vmatmul.mubr.f32.gmra.mxu0 %v1695
    %v1763 = vpop.f32.mrf.mxu0
    %v1764 = vadd.f32 %v1693, %v1763
    %v1765 = vpop.f32.mrf.mxu0
    %1766 = vdwg.mxu0
    %v1767 = vmax.f32 %v1764, 0.0
    %v1768 = vadd.f32 %v1340, %v1767
    %s1769 = scalar_lea.vmem %s5, 32
    %v1770 = vld [vmem:[%s1769] sm:$0xff]
    %1771 = vmatprep.subr.mxu0 0.0
    %1772 = vmatpush1.msra.mxu0 0.0
    %1773 = vmatprep.subr.mxu0 0.0
    %1774 = vmatpush1.msra.mxu0 0.0
    %1775 = vmatprep.subr.mxu0 0.0
    %1776 = vmatpush1.msra.mxu0 0.0
    %1777 = vmatprep.subr.mxu0 0.0
    %1778 = vmatpush1.msra.mxu0 0.0
    %1779 = vmatprep.subr.mxu0 0.0
    %1780 = vmatpush1.msra.mxu0 0.0
    %1781 = vmatprep.subr.mxu0 0.0
    %1782 = vmatpush1.msra.mxu0 0.0
    %1783 = vmatprep.subr.mxu0 0.0
    %1784 = vmatpush1.msra.mxu0 0.0
    %1785 = vmatprep.subr.mxu0 0.0
    %1786 = vmatpush1.msra.mxu0 0.0
    %1787 = vmatprep.subr.mxu0 0.0
    %1788 = vmatpush1.msra.mxu0 0.0
    %1789 = vmatprep.subr.mxu0 0.0
    %1790 = vmatpush1.msra.mxu0 0.0
    %1791 = vmatprep.subr.mxu0 0.0
    %1792 = vmatpush1.msra.mxu0 0.0
    %1793 = vmatprep.subr.mxu0 0.0
    %1794 = vmatpush1.msra.mxu0 0.0
    %1795 = vmatprep.subr.mxu0 0.0
    %1796 = vmatpush1.msra.mxu0 0.0
    %1797 = vmatprep.subr.mxu0 0.0
    %1798 = vmatpush1.msra.mxu0 0.0
    %1799 = vmatprep.subr.mxu0 0.0
    %1800 = vmatpush1.msra.mxu0 %v1613
    %1801 = vmatprep.subr.mxu0 0.0
    %1802 = vmatpush1.msra.mxu0 %v1612
    %1803 = vmatprep.subr.mxu0 0.0
    %1804 = vmatpush2.msra.mxu0 0.0
    %1805 = vmatprep.subr.mxu0 0.0
    %1806 = vmatpush2.msra.mxu0 0.0
    %1807 = vmatprep.subr.mxu0 0.0
    %1808 = vmatpush2.msra.mxu0 0.0
    %1809 = vmatprep.subr.mxu0 0.0
    %1810 = vmatpush2.msra.mxu0 0.0
    %1811 = vmatprep.subr.mxu0 0.0
    %1812 = vmatpush2.msra.mxu0 0.0
    %1813 = vmatprep.subr.mxu0 0.0
    %1814 = vmatpush2.msra.mxu0 0.0
    %1815 = vmatprep.subr.mxu0 0.0
    %1816 = vmatpush2.msra.mxu0 0.0
    %1817 = vmatprep.subr.mxu0 0.0
    %1818 = vmatpush2.msra.mxu0 0.0
    %1819 = vmatprep.subr.mxu0 0.0
    %1820 = vmatpush2.msra.mxu0 0.0
    %1821 = vmatprep.subr.mxu0 0.0
    %1822 = vmatpush2.msra.mxu0 0.0
    %1823 = vmatprep.subr.mxu0 0.0
    %1824 = vmatpush2.msra.mxu0 0.0
    %1825 = vmatprep.subr.mxu0 0.0
    %1826 = vmatpush2.msra.mxu0 0.0
    %1827 = vmatprep.subr.mxu0 0.0
    %1828 = vmatpush2.msra.mxu0 0.0
    %1829 = vmatprep.subr.mxu0 0.0
    %1830 = vmatpush2.msra.mxu0 0.0
    %1831 = vmatprep.subr.mxu0 0.0
    %1832 = vmatpush2.msra.mxu0 0.0
    %1833 = vmatprep.subr.mxu0 0.0
    %1834 = vmatpush2.msra.mxu0 0.0
    %1835 = vmatprep.mubr.f32.mxu0 0.0
    %1836 = vmatmul.mubr.f32.gmra.mxu0 %v54
    %v1837 = vpop.f32.mrf.mxu0
    %v1838 = vadd.f32 0.0, %v1837
    %v1839 = vpop.f32.mrf.mxu0
    %1840 = vmatprep.mubr.f32.mxu0 0.0
    %1841 = vmatmul.mubr.f32.gmra.mxu0 %v57
    %v1842 = vpop.f32.mrf.mxu0
    %v1843 = vadd.f32 0.0, %v1842
    %v1844 = vpop.f32.mrf.mxu0
    %1845 = vdwg.mxu0
    %s1846 = scalar_lea.vmem %s3, 128
    %v1847 = vld [vmem:[%s1846] sm:$0xff]
    %v1848 = vld [vmem:[%s1846 + $0x8] sm:$0xff]
    %v1849 = vld [vmem:[%s1846 + $0x10] sm:$0xff]
    %v1850 = vld [vmem:[%s1846 + $0x18] sm:$0xff]
    %v1851 = vlaneseq
    %v1852 = vshrl.u32 %v1851, 7
    %v1853 = vsub.s32 0, %v1852
    %v1854 = vrot.slane %v1770, %v1853
    %v1856 = vsel %vm142, %v1838, 0
    %v1859 = vsel %vm142, %v1843, 0
    %1861 = vmatprep.subr.mxu0 0.0
    %1862 = vmatpush1.msra.mxu0 0.0
    %1863 = vmatprep.subr.mxu0 0.0
    %1864 = vmatpush1.msra.mxu0 0.0
    %1865 = vmatprep.subr.mxu0 0.0
    %1866 = vmatpush1.msra.mxu0 0.0
    %1867 = vmatprep.subr.mxu0 0.0
    %1868 = vmatpush1.msra.mxu0 0.0
    %1869 = vmatprep.subr.mxu0 0.0
    %1870 = vmatpush1.msra.mxu0 0.0
    %1871 = vmatprep.subr.mxu0 0.0
    %1872 = vmatpush1.msra.mxu0 0.0
    %1873 = vmatprep.subr.mxu0 0.0
    %1874 = vmatpush1.msra.mxu0 0.0
    %1875 = vmatprep.subr.mxu0 0.0
    %1876 = vmatpush1.msra.mxu0 0.0
    %1877 = vmatprep.subr.mxu0 0.0
    %1878 = vmatpush1.msra.mxu0 0.0
    %1879 = vmatprep.subr.mxu0 0.0
    %1880 = vmatpush1.msra.mxu0 0.0
    %1881 = vmatprep.subr.mxu0 0.0
    %1882 = vmatpush1.msra.mxu0 0.0
    %1883 = vmatprep.subr.mxu0 0.0
    %1884 = vmatpush1.msra.mxu0 0.0
    %1885 = vmatprep.subr.mxu0 0.0
    %1886 = vmatpush1.msra.mxu0 %v1850
    %1887 = vmatprep.subr.mxu0 0.0
    %1888 = vmatpush1.msra.mxu0 %v1849
    %1889 = vmatprep.subr.mxu0 0.0
    %1890 = vmatpush1.msra.mxu0 %v1848
    %1891 = vmatprep.subr.mxu0 0.0
    %1892 = vmatpush1.msra.mxu0 %v1847
    %1893 = vmatprep.subr.mxu0 0.0
    %1894 = vmatpush2.msra.mxu0 0.0
    %1895 = vmatprep.subr.mxu0 0.0
    %1896 = vmatpush2.msra.mxu0 0.0
    %1897 = vmatprep.subr.mxu0 0.0
    %1898 = vmatpush2.msra.mxu0 0.0
    %1899 = vmatprep.subr.mxu0 0.0
    %1900 = vmatpush2.msra.mxu0 0.0
    %1901 = vmatprep.subr.mxu0 0.0
    %1902 = vmatpush2.msra.mxu0 0.0
    %1903 = vmatprep.subr.mxu0 0.0
    %1904 = vmatpush2.msra.mxu0 0.0
    %1905 = vmatprep.subr.mxu0 0.0
    %1906 = vmatpush2.msra.mxu0 0.0
    %1907 = vmatprep.subr.mxu0 0.0
    %1908 = vmatpush2.msra.mxu0 0.0
    %1909 = vmatprep.subr.mxu0 0.0
    %1910 = vmatpush2.msra.mxu0 0.0
    %1911 = vmatprep.subr.mxu0 0.0
    %1912 = vmatpush2.msra.mxu0 0.0
    %1913 = vmatprep.subr.mxu0 0.0
    %1914 = vmatpush2.msra.mxu0 0.0
    %1915 = vmatprep.subr.mxu0 0.0
    %1916 = vmatpush2.msra.mxu0 0.0
    %1917 = vmatprep.subr.mxu0 0.0
    %1918 = vmatpush2.msra.mxu0 0.0
    %1919 = vmatprep.subr.mxu0 0.0
    %1920 = vmatpush2.msra.mxu0 0.0
    %1921 = vmatprep.subr.mxu0 0.0
    %1922 = vmatpush2.msra.mxu0 0.0
    %1923 = vmatprep.subr.mxu0 0.0
    %1924 = vmatpush2.msra.mxu0 0.0
    %1925 = vmatprep.mubr.f32.mxu0 0.0
    %1926 = vmatmul.mubr.f32.gmra.mxu0 %v1856
    %v1927 = vpop.f32.mrf.mxu0
    %v1928 = vadd.f32 %v1854, %v1927
    %v1929 = vpop.f32.mrf.mxu0
    %1930 = vmatprep.mubr.f32.mxu0 0.0
    %1931 = vmatmul.mubr.f32.gmra.mxu0 %v1859
    %v1932 = vpop.f32.mrf.mxu0
    %v1933 = vadd.f32 %v1854, %v1932
    %v1934 = vpop.f32.mrf.mxu0
    %1935 = vdwg.mxu0
    %v1936 = vmax.f32 %v1928, 0.0
    %v1937 = vmax.f32 %v1933, 0.0
    %s1938 = scalar_lea.vmem %s4, 128
    %v1939 = vld [vmem:[%s1938] sm:$0xff]
    %v1940 = vld [vmem:[%s1938 + $0x8] sm:$0xff]
    %v1941 = vld [vmem:[%s1938 + $0x10] sm:$0xff]
    %v1942 = vld [vmem:[%s1938 + $0x18] sm:$0xff]
    %v1943 = vlaneseq
    %v1944 = vshrl.u32 %v1943, 7
    %v1945 = vsub.s32 1, %v1944
    %v1946 = vrot.slane %v1770, %v1945
    %v1948 = vsel %vm142, %v1936, 0
    %v1951 = vsel %vm142, %v1937, 0
    %1953 = vmatprep.subr.mxu0 0.0
    %1954 = vmatpush1.msra.mxu0 0.0
    %1955 = vmatprep.subr.mxu0 0.0
    %1956 = vmatpush1.msra.mxu0 0.0
    %1957 = vmatprep.subr.mxu0 0.0
    %1958 = vmatpush1.msra.mxu0 0.0
    %1959 = vmatprep.subr.mxu0 0.0
    %1960 = vmatpush1.msra.mxu0 0.0
    %1961 = vmatprep.subr.mxu0 0.0
    %1962 = vmatpush1.msra.mxu0 0.0
    %1963 = vmatprep.subr.mxu0 0.0
    %1964 = vmatpush1.msra.mxu0 0.0
    %1965 = vmatprep.subr.mxu0 0.0
    %1966 = vmatpush1.msra.mxu0 0.0
    %1967 = vmatprep.subr.mxu0 0.0
    %1968 = vmatpush1.msra.mxu0 0.0
    %1969 = vmatprep.subr.mxu0 0.0
    %1970 = vmatpush1.msra.mxu0 0.0
    %1971 = vmatprep.subr.mxu0 0.0
    %1972 = vmatpush1.msra.mxu0 0.0
    %1973 = vmatprep.subr.mxu0 0.0
    %1974 = vmatpush1.msra.mxu0 0.0
    %1975 = vmatprep.subr.mxu0 0.0
    %1976 = vmatpush1.msra.mxu0 0.0
    %1977 = vmatprep.subr.mxu0 0.0
    %1978 = vmatpush1.msra.mxu0 %v1942
    %1979 = vmatprep.subr.mxu0 0.0
    %1980 = vmatpush1.msra.mxu0 %v1941
    %1981 = vmatprep.subr.mxu0 0.0
    %1982 = vmatpush1.msra.mxu0 %v1940
    %1983 = vmatprep.subr.mxu0 0.0
    %1984 = vmatpush1.msra.mxu0 %v1939
    %1985 = vmatprep.subr.mxu0 0.0
    %1986 = vmatpush2.msra.mxu0 0.0
    %1987 = vmatprep.subr.mxu0 0.0
    %1988 = vmatpush2.msra.mxu0 0.0
    %1989 = vmatprep.subr.mxu0 0.0
    %1990 = vmatpush2.msra.mxu0 0.0
    %1991 = vmatprep.subr.mxu0 0.0
    %1992 = vmatpush2.msra.mxu0 0.0
    %1993 = vmatprep.subr.mxu0 0.0
    %1994 = vmatpush2.msra.mxu0 0.0
    %1995 = vmatprep.subr.mxu0 0.0
    %1996 = vmatpush2.msra.mxu0 0.0
    %1997 = vmatprep.subr.mxu0 0.0
    %1998 = vmatpush2.msra.mxu0 0.0
    %1999 = vmatprep.subr.mxu0 0.0
    %2000 = vmatpush2.msra.mxu0 0.0
    %2001 = vmatprep.subr.mxu0 0.0
    %2002 = vmatpush2.msra.mxu0 0.0
    %2003 = vmatprep.subr.mxu0 0.0
    %2004 = vmatpush2.msra.mxu0 0.0
    %2005 = vmatprep.subr.mxu0 0.0
    %2006 = vmatpush2.msra.mxu0 0.0
    %2007 = vmatprep.subr.mxu0 0.0
    %2008 = vmatpush2.msra.mxu0 0.0
    %2009 = vmatprep.subr.mxu0 0.0
    %2010 = vmatpush2.msra.mxu0 0.0
    %2011 = vmatprep.subr.mxu0 0.0
    %2012 = vmatpush2.msra.mxu0 0.0
    %2013 = vmatprep.subr.mxu0 0.0
    %2014 = vmatpush2.msra.mxu0 0.0
    %2015 = vmatprep.subr.mxu0 0.0
    %2016 = vmatpush2.msra.mxu0 0.0
    %2017 = vmatprep.mubr.f32.mxu0 0.0
    %2018 = vmatmul.mubr.f32.gmra.mxu0 %v1948
    %v2019 = vpop.f32.mrf.mxu0
    %v2020 = vadd.f32 %v1946, %v2019
    %v2021 = vpop.f32.mrf.mxu0
    %2022 = vmatprep.mubr.f32.mxu0 0.0
    %2023 = vmatmul.mubr.f32.gmra.mxu0 %v1951
    %v2024 = vpop.f32.mrf.mxu0
    %v2025 = vadd.f32 %v1946, %v2024
    %v2026 = vpop.f32.mrf.mxu0
    %2027 = vdwg.mxu0
    %v2028 = vmax.f32 %v2020, 0.0
    %v2029 = vmax.f32 %v2025, 0.0
    %v2030 = vlaneseq
    %v2031 = vshrl.u32 %v2030, 7
    %v2032 = vsub.s32 2, %v2031
    %v2033 = vrot.slane %v1770, %v2032
    %v2034 = vmul.f32 %v2028, %v2033
    %v2035 = vmul.f32 %v2029, %v2033
    %v2036 = vlaneseq
    %v2037 = vshrl.u32 %v2036, 7
    %v2038 = vsub.s32 3, %v2037
    %v2039 = vrot.slane %v1770, %v2038
    %v2040 = vadd.f32 %v2034, %v2039
    %v2041 = vadd.f32 %v2035, %v2039
    %2042 = vmatprep.subr.mxu0 0.0
    %2043 = vmatpush1.msra.mxu0 0.0
    %2044 = vmatprep.subr.mxu0 0.0
    %2045 = vmatpush1.msra.mxu0 0.0
    %2046 = vmatprep.subr.mxu0 0.0
    %2047 = vmatpush1.msra.mxu0 0.0
    %2048 = vmatprep.subr.mxu0 0.0
    %2049 = vmatpush1.msra.mxu0 0.0
    %2050 = vmatprep.subr.mxu0 0.0
    %2051 = vmatpush1.msra.mxu0 0.0
    %2052 = vmatprep.subr.mxu0 0.0
    %2053 = vmatpush1.msra.mxu0 0.0
    %2054 = vmatprep.subr.mxu0 0.0
    %2055 = vmatpush1.msra.mxu0 0.0
    %2056 = vmatprep.subr.mxu0 0.0
    %2057 = vmatpush1.msra.mxu0 0.0
    %2058 = vmatprep.subr.mxu0 0.0
    %2059 = vmatpush1.msra.mxu0 0.0
    %2060 = vmatprep.subr.mxu0 0.0
    %2061 = vmatpush1.msra.mxu0 0.0
    %2062 = vmatprep.subr.mxu0 0.0
    %2063 = vmatpush1.msra.mxu0 0.0
    %2064 = vmatprep.subr.mxu0 0.0
    %2065 = vmatpush1.msra.mxu0 0.0
    %2066 = vmatprep.subr.mxu0 0.0
    %2067 = vmatpush1.msra.mxu0 0.0
    %2068 = vmatprep.subr.mxu0 0.0
    %2069 = vmatpush1.msra.mxu0 0.0
    %2070 = vmatprep.subr.mxu0 0.0
    %2071 = vmatpush1.msra.mxu0 %v2041
    %2072 = vmatprep.subr.mxu0 0.0
    %2073 = vmatpush1.msra.mxu0 %v2040
    %2074 = vmatprep.subr.mxu0 0.0
    %2075 = vmatpush2.msra.mxu0 0.0
    %2076 = vmatprep.subr.mxu0 0.0
    %2077 = vmatpush2.msra.mxu0 0.0
    %2078 = vmatprep.subr.mxu0 0.0
    %2079 = vmatpush2.msra.mxu0 0.0
    %2080 = vmatprep.subr.mxu0 0.0
    %2081 = vmatpush2.msra.mxu0 0.0
    %2082 = vmatprep.subr.mxu0 0.0
    %2083 = vmatpush2.msra.mxu0 0.0
    %2084 = vmatprep.subr.mxu0 0.0
    %2085 = vmatpush2.msra.mxu0 0.0
    %2086 = vmatprep.subr.mxu0 0.0
    %2087 = vmatpush2.msra.mxu0 0.0
    %2088 = vmatprep.subr.mxu0 0.0
    %2089 = vmatpush2.msra.mxu0 0.0
    %2090 = vmatprep.subr.mxu0 0.0
    %2091 = vmatpush2.msra.mxu0 0.0
    %2092 = vmatprep.subr.mxu0 0.0
    %2093 = vmatpush2.msra.mxu0 0.0
    %2094 = vmatprep.subr.mxu0 0.0
    %2095 = vmatpush2.msra.mxu0 0.0
    %2096 = vmatprep.subr.mxu0 0.0
    %2097 = vmatpush2.msra.mxu0 0.0
    %2098 = vmatprep.subr.mxu0 0.0
    %2099 = vmatpush2.msra.mxu0 0.0
    %2100 = vmatprep.subr.mxu0 0.0
    %2101 = vmatpush2.msra.mxu0 0.0
    %2102 = vmatprep.subr.mxu0 0.0
    %2103 = vmatpush2.msra.mxu0 0.0
    %2104 = vmatprep.subr.mxu0 0.0
    %2105 = vmatpush2.msra.mxu0 0.0
    %2106 = vmatprep.mubr.f32.mxu0 0.0
    %2107 = vmatmul.mubr.f32.gmra.mxu0 %v330
    %v2108 = vpop.f32.mrf.mxu0
    %v2109 = vadd.f32 0.0, %v2108
    %v2110 = vpop.f32.mrf.mxu0
    %2111 = vdwg.mxu0
    %v2112 = vadd.f32 %v1768, %v2109
    %s2113 = scalar_lea.vmem %s6, 128
    %v2114 = vld [vmem:[%s2113] sm:$0xff]
    %v2115 = vld [vmem:[%s2113 + $0x8] sm:$0xff]
    %v2116 = vld [vmem:[%s2113 + $0x10] sm:$0xff]
    %v2117 = vld [vmem:[%s2113 + $0x18] sm:$0xff]
    %v2118 = vlaneseq
    %v2119 = vshrl.u32 %v2118, 7
    %v2120 = vsub.s32 4, %v2119
    %v2121 = vrot.slane %v1770, %v2120
    %v2123 = vsel %vm142, %v2112, 0
    %2125 = vmatprep.subr.mxu0 0.0
    %2126 = vmatpush1.msra.mxu0 0.0
    %2127 = vmatprep.subr.mxu0 0.0
    %2128 = vmatpush1.msra.mxu0 0.0
    %2129 = vmatprep.subr.mxu0 0.0
    %2130 = vmatpush1.msra.mxu0 0.0
    %2131 = vmatprep.subr.mxu0 0.0
    %2132 = vmatpush1.msra.mxu0 0.0
    %2133 = vmatprep.subr.mxu0 0.0
    %2134 = vmatpush1.msra.mxu0 0.0
    %2135 = vmatprep.subr.mxu0 0.0
    %2136 = vmatpush1.msra.mxu0 0.0
    %2137 = vmatprep.subr.mxu0 0.0
    %2138 = vmatpush1.msra.mxu0 0.0
    %2139 = vmatprep.subr.mxu0 0.0
    %2140 = vmatpush1.msra.mxu0 0.0
    %2141 = vmatprep.subr.mxu0 0.0
    %2142 = vmatpush1.msra.mxu0 0.0
    %2143 = vmatprep.subr.mxu0 0.0
    %2144 = vmatpush1.msra.mxu0 0.0
    %2145 = vmatprep.subr.mxu0 0.0
    %2146 = vmatpush1.msra.mxu0 0.0
    %2147 = vmatprep.subr.mxu0 0.0
    %2148 = vmatpush1.msra.mxu0 0.0
    %2149 = vmatprep.subr.mxu0 0.0
    %2150 = vmatpush1.msra.mxu0 %v2117
    %2151 = vmatprep.subr.mxu0 0.0
    %2152 = vmatpush1.msra.mxu0 %v2116
    %2153 = vmatprep.subr.mxu0 0.0
    %2154 = vmatpush1.msra.mxu0 %v2115
    %2155 = vmatprep.subr.mxu0 0.0
    %2156 = vmatpush1.msra.mxu0 %v2114
    %2157 = vmatprep.subr.mxu0 0.0
    %2158 = vmatpush2.msra.mxu0 0.0
    %2159 = vmatprep.subr.mxu0 0.0
    %2160 = vmatpush2.msra.mxu0 0.0
    %2161 = vmatprep.subr.mxu0 0.0
    %2162 = vmatpush2.msra.mxu0 0.0
    %2163 = vmatprep.subr.mxu0 0.0
    %2164 = vmatpush2.msra.mxu0 0.0
    %2165 = vmatprep.subr.mxu0 0.0
    %2166 = vmatpush2.msra.mxu0 0.0
    %2167 = vmatprep.subr.mxu0 0.0
    %2168 = vmatpush2.msra.mxu0 0.0
    %2169 = vmatprep.subr.mxu0 0.0
    %2170 = vmatpush2.msra.mxu0 0.0
    %2171 = vmatprep.subr.mxu0 0.0
    %2172 = vmatpush2.msra.mxu0 0.0
    %2173 = vmatprep.subr.mxu0 0.0
    %2174 = vmatpush2.msra.mxu0 0.0
    %2175 = vmatprep.subr.mxu0 0.0
    %2176 = vmatpush2.msra.mxu0 0.0
    %2177 = vmatprep.subr.mxu0 0.0
    %2178 = vmatpush2.msra.mxu0 0.0
    %2179 = vmatprep.subr.mxu0 0.0
    %2180 = vmatpush2.msra.mxu0 0.0
    %2181 = vmatprep.subr.mxu0 0.0
    %2182 = vmatpush2.msra.mxu0 0.0
    %2183 = vmatprep.subr.mxu0 0.0
    %2184 = vmatpush2.msra.mxu0 0.0
    %2185 = vmatprep.subr.mxu0 0.0
    %2186 = vmatpush2.msra.mxu0 0.0
    %2187 = vmatprep.subr.mxu0 0.0
    %2188 = vmatpush2.msra.mxu0 0.0
    %2189 = vmatprep.mubr.f32.mxu0 0.0
    %2190 = vmatmul.mubr.f32.gmra.mxu0 %v2123
    %v2191 = vpop.f32.mrf.mxu0
    %v2192 = vadd.f32 %v2121, %v2191
    %v2193 = vpop.f32.mrf.mxu0
    %2194 = vdwg.mxu0
    %v2195 = vmax.f32 %v2192, 0.0
    %v2196 = vld [vmem:[%s7] sm:$0xff]
    %v2197 = vld [vmem:[%s7 + $0x8] sm:$0xff]
    %v2198 = vld [vmem:[%s7 + $0x10] sm:$0xff]
    %v2199 = vld [vmem:[%s7 + $0x18] sm:$0xff]
    %v2200 = vld [vmem:[%s8] sm:$0x1]
    %v2202 = vlaneseq
    %v2203 = vshrl.u32 %v2202, 7
    %v2204 = vsub.s32 0, %v2203
    %v2205 = vrot.slane %v2200, %v2204
    %v2208 = vsel %vm142, %v2195, 0
    %2210 = vmatprep.subr.mxu0 0.0
    %2211 = vmatpush1.msra.mxu0 0.0
    %2212 = vmatprep.subr.mxu0 0.0
    %2213 = vmatpush1.msra.mxu0 0.0
    %2214 = vmatprep.subr.mxu0 0.0
    %2215 = vmatpush1.msra.mxu0 0.0
    %2216 = vmatprep.subr.mxu0 0.0
    %2217 = vmatpush1.msra.mxu0 0.0
    %2218 = vmatprep.subr.mxu0 0.0
    %2219 = vmatpush1.msra.mxu0 0.0
    %2220 = vmatprep.subr.mxu0 0.0
    %2221 = vmatpush1.msra.mxu0 0.0
    %2222 = vmatprep.subr.mxu0 0.0
    %2223 = vmatpush1.msra.mxu0 0.0
    %2224 = vmatprep.subr.mxu0 0.0
    %2225 = vmatpush1.msra.mxu0 0.0
    %2226 = vmatprep.subr.mxu0 0.0
    %2227 = vmatpush1.msra.mxu0 0.0
    %2228 = vmatprep.subr.mxu0 0.0
    %2229 = vmatpush1.msra.mxu0 0.0
    %2230 = vmatprep.subr.mxu0 0.0
    %2231 = vmatpush1.msra.mxu0 0.0
    %2232 = vmatprep.subr.mxu0 0.0
    %2233 = vmatpush1.msra.mxu0 0.0
    %2234 = vmatprep.subr.mxu0 0.0
    %2235 = vmatpush1.msra.mxu0 %v2199
    %2236 = vmatprep.subr.mxu0 0.0
    %2237 = vmatpush1.msra.mxu0 %v2198
    %2238 = vmatprep.subr.mxu0 0.0
    %2239 = vmatpush1.msra.mxu0 %v2197
    %2240 = vmatprep.subr.mxu0 0.0
    %2241 = vmatpush1.msra.mxu0 %v2196
    %2242 = vmatprep.subr.mxu0 0.0
    %2243 = vmatpush2.msra.mxu0 0.0
    %2244 = vmatprep.subr.mxu0 0.0
    %2245 = vmatpush2.msra.mxu0 0.0
    %2246 = vmatprep.subr.mxu0 0.0
    %2247 = vmatpush2.msra.mxu0 0.0
    %2248 = vmatprep.subr.mxu0 0.0
    %2249 = vmatpush2.msra.mxu0 0.0
    %2250 = vmatprep.subr.mxu0 0.0
    %2251 = vmatpush2.msra.mxu0 0.0
    %2252 = vmatprep.subr.mxu0 0.0
    %2253 = vmatpush2.msra.mxu0 0.0
    %2254 = vmatprep.subr.mxu0 0.0
    %2255 = vmatpush2.msra.mxu0 0.0
    %2256 = vmatprep.subr.mxu0 0.0
    %2257 = vmatpush2.msra.mxu0 0.0
    %2258 = vmatprep.subr.mxu0 0.0
    %2259 = vmatpush2.msra.mxu0 0.0
    %2260 = vmatprep.subr.mxu0 0.0
    %2261 = vmatpush2.msra.mxu0 0.0
    %2262 = vmatprep.subr.mxu0 0.0
    %2263 = vmatpush2.msra.mxu0 0.0
    %2264 = vmatprep.subr.mxu0 0.0
    %2265 = vmatpush2.msra.mxu0 0.0
    %2266 = vmatprep.subr.mxu0 0.0
    %2267 = vmatpush2.msra.mxu0 0.0
    %2268 = vmatprep.subr.mxu0 0.0
    %2269 = vmatpush2.msra.mxu0 0.0
    %2270 = vmatprep.subr.mxu0 0.0
    %2271 = vmatpush2.msra.mxu0 0.0
    %2272 = vmatprep.subr.mxu0 0.0
    %2273 = vmatpush2.msra.mxu0 0.0
    %2274 = vmatprep.mubr.f32.mxu0 0.0
    %2275 = vmatmul.mubr.f32.gmra.mxu0 %v2208
    %v2276 = vpop.f32.mrf.mxu0
    %v2277 = vadd.f32 %v2205, %v2276
    %v2278 = vpop.f32.mrf.mxu0
    %2279 = vdwg.mxu0
    %2280 = vst [vmem:[%s9] sm:$0xff] %v2277
    // Predicated region
    $region42: #{net_forward.1} parent=1 // pred_check
      _
    $region43: #{net_forward.1} parent=1 // pred_check_branch
      %2282 = sbr.rel (0) target = $region45
    $region44: #{net_forward.1} parent=1 // pred_region
      _
    $region45: #{net_forward.1} parent=1 // pred_fallthru
      _
    // Predicated region
    $region46: #{net_forward.1} parent=1 // pred_check
      _
    $region47: #{net_forward.1} parent=1 // pred_check_branch
      %2284 = sbr.rel (0) target = $region49
    $region48: #{net_forward.1} parent=1 // pred_region
      _
    $region49: #{net_forward.1} parent=1 // pred_fallthru
      _
    %2285 = vsyncpa [#allocation3], 1

</llo_original>
